<compile_context>
chip_gen: v5e
topology: v5e:2x2
jax: 0.10.0
libtpu: 0.0.40
codegen_flags: <defaults>
</compile_context>

<pallas_src>
import warnings

import jax
import jax.numpy as jnp
from jax.experimental import pallas as pl
from jax.experimental.pallas import tpu as pltpu

_MiB = 1 << 20
_VMEM_BUDGET = 32 * _MiB      # target for 2x(in block) + 2x(out block), padded
_VMEM_LIMIT_CAP = 56 * _MiB   # < v7x's 64 MiB physical VMEM
_VMEM_LIMIT_FLOOR = 32 * _MiB


def _round_up(a, b):
    return -(-a // b) * b


def _divisors(n):
    return [d for d in range(1, n + 1) if n % d == 0]


def _sublane(itemsize):
    # Native sublane tile multiple per dtype width (f32: 8, bf16/f16: 16, i8: 32).
    return {4: 8, 2: 16, 1: 32}.get(itemsize, 8)


def _plan(shape, dtype, ry, rx):
    """Pick (cblk, hoblk, flat_ok) for the grid (B, C//cblk, Ho//hoblk)."""
    B, C, H, W = shape
    Ho, Wo = H // ry, W // rx
    itemsize = jnp.dtype(dtype).itemsize
    sub = _sublane(itemsize)

    # Padded per-step VMEM bytes (double-buffered input + output blocks) as a
    # function of (cblk, hoblk); lane dim pads to 128, sublane dim to `sub`.
    def footprint(cblk, hoblk):
        in_blk = cblk * _round_up(hoblk * ry, sub) * _round_up(W, 128) * itemsize
        out_blk = (cblk * ry * rx * _round_up(hoblk, sub)
                   * _round_up(Wo, 128) * itemsize)
        return 2 * (in_blk + out_blk)

    # Channel block: largest divisor of C fitting the budget at full height.
    cblk = 1
    for d in _divisors(C):
        if footprint(d, Ho) <= _VMEM_BUDGET:
            cblk = d
    G = C // cblk

    # Height block: full Ho unless (a) even a single-channel block busts the
    # budget, or (b) the grid is so small that v7x's two TensorCores would
    # starve -- then split on an H axis instead of shrinking the channel block.
    h_divs = sorted(d for d in _divisors(Ho) if d % sub == 0) or [Ho]
    hoblk = Ho
    while footprint(cblk, hoblk) > _VMEM_BUDGET:
        smaller = [d for d in h_divs if d < hoblk]
        if not smaller:
            break
        hoblk = max(smaller)
    if B * G * (Ho // hoblk) < 4:
        want = -(-4 // (B * G))   # splits needed for >= 4 grid steps
        cand = [d for d in h_divs
                if d <= hoblk and Ho // d >= want and footprint(cblk, d) >= 4 * _MiB]
        if cand:
            hoblk = max(cand)

    # Lane-dense flat-output mode (unmasked vst) is worth trying when Wo < 128.
    flat_ok = (Wo % 128 != 0
               and (hoblk * Wo) % 128 == 0
               and ((cblk * ry * rx) % 8 == 0 or cblk == C))
    return cblk, hoblk, flat_ok


def _build(shape, dtype, ry, rx, cblk, hoblk, mode):
    """Return run(x) -> y for one lowering mode (not yet jitted)."""
    B, C, H, W = shape
    Ho, Wo = H // ry, W // rx
    ryrx = ry * rx
    G = C // cblk
    Hs = Ho // hoblk
    hblk = hoblk * ry
    itemsize = jnp.dtype(dtype).itemsize
    sub = _sublane(itemsize)
    flat = mode == "copy_vec_flat"
    nbytes = B * C * H * W * itemsize

    # One-hot selection is exact for floats; integer inputs never reach the
    # matmul modes (see _select_runner), so sel_dtype only matters for floats.
    sel_dtype = dtype if jnp.issubdtype(dtype, jnp.floating) else jnp.float32

    # ---------------- kernels ----------------
    def kernel_copy_vec(x_ref, o_ref):
        # Pure data movement, vectorized over the channel block: ry*rx slab
        # copies per grid step.  Rows: sublane-strided read; columns: lane-
        # strided read; output channel interleave: strided store on the
        # (untiled) channel dim.
        # TODO(synk): for bf16/f16 with rx == 2, a bitcast-to-u32 + VPU
        # shift/mask de-interleave would avoid the XLU lane gather entirely.
        for dy in range(ry):
            for dx in range(rx):
                slab = x_ref[0, :, pl.ds(dy, hoblk, stride=ry),
                             pl.ds(dx, Wo, stride=rx)]           # (cblk, hoblk, Wo)
                if flat:
                    slab = slab.reshape(cblk, hoblk * Wo)
                o_ref[0, pl.ds(dy * rx + dx, cblk, stride=ryrx)] = slab

    def kernel_copy_unrolled(x_ref, o_ref):
        # Previous (proven-lowering) per-channel formulation; safety fallback.
        for c in range(cblk):
            for dy in range(ry):
                for dx in range(rx):
                    o_ref[0, (c * ry + dy) * rx + dx] = x_ref[
                        0, c, pl.ds(dy, hoblk, stride=ry), pl.ds(dx, Wo, stride=rx)]

    def kernel_row_strided(x_ref, csel_ref, o_ref):
        # Rows via sublane-strided read (all channels at once); columns via ONE
        # fused MXU matmul per dy with a (W, rx*Wo) one-hot selector.
        for dy in range(ry):
            rows = x_ref[0, :, pl.ds(dy, hoblk, stride=ry), :]   # (cblk, hoblk, W)
            rows = rows.astype(sel_dtype).reshape(cblk * hoblk, W)
            out = jnp.dot(rows, csel_ref[...],
                          preferred_element_type=jnp.float32)    # (cblk*hoblk, rx*Wo)
            out = out.reshape(cblk, hoblk, rx * Wo).astype(o_ref.dtype)
            for dx in range(rx):
                o_ref[0, pl.ds(dy * rx + dx, cblk, stride=ryrx)] = (
                    out[:, :, dx * Wo:(dx + 1) * Wo])

    def kernel_matmul(x_ref, rsel_ref, csel_ref, o_ref):
        # Last resort: no strided reads/stores at all, per-channel two-matmul
        # formulation with VMEM-resident one-hot selectors.
        for c in range(cblk):
            xc = x_ref[0, c].astype(sel_dtype)                    # (hblk, W)
            for dy in range(ry):
                rows = jnp.dot(rsel_ref[dy], xc,
                               preferred_element_type=jnp.float32).astype(sel_dtype)
                out = jnp.dot(rows, csel_ref[...],
                              preferred_element_type=jnp.float32)  # (hoblk, rx*Wo)
                for dx in range(rx):
                    o_ref[0, (c * ry + dy) * rx + dx] = (
                        out[:, dx * Wo:(dx + 1) * Wo].astype(o_ref.dtype))

    # ---------------- specs, selectors, cost ----------------
    in_specs = [pl.BlockSpec((1, cblk, hblk, W), lambda b, g, h: (b, g, h, 0))]
    extra_args = []
    sel_bytes = 0
    flops = 0

    if mode in ("row_strided", "matmul"):
        # csel[w, dx*Wo + wo] = 1 iff w == wo*rx + dx.  Constant index_map ->
        # DMA'd once, stays VMEM-resident across grid steps.
        w_i = jax.lax.broadcasted_iota(jnp.int32, (W, rx * Wo), 0)
        n_i = jax.lax.broadcasted_iota(jnp.int32, (W, rx * Wo), 1)
        csel = (w_i == (n_i % Wo) * rx + n_i // Wo).astype(sel_dtype)
        csel_spec = pl.BlockSpec((W, rx * Wo), lambda b, g, h: (0, 0))
        sel_bytes += int(csel.size) * jnp.dtype(sel_dtype).itemsize
        flops += 2 * B * C * Ho * W * (rx * Wo)
        if mode == "matmul":
            # rsel[dy, ho, h] = 1 iff h == ho*ry + dy (per H-block).
            h_i = jax.lax.broadcasted_iota(jnp.int32, (ry, hoblk, hblk), 2)
            ho_i = jax.lax.broadcasted_iota(jnp.int32, (ry, hoblk, hblk), 1)
            dy_i = jax.lax.broadcasted_iota(jnp.int32, (ry, hoblk, hblk), 0)
            rsel = (h_i == ho_i * ry + dy_i).astype(sel_dtype)
            rsel_spec = pl.BlockSpec((ry, hoblk, hblk), lambda b, g, h: (0, 0, 0))
            sel_bytes += int(rsel.size) * jnp.dtype(sel_dtype).itemsize
            flops += 2 * B * C * ry * Ho * hblk * W
            in_specs += [rsel_spec, csel_spec]
            extra_args += [rsel, csel]
        else:
            in_specs += [csel_spec]
            extra_args += [csel]

    if flat:
        out_shape = jax.ShapeDtypeStruct((B, C * ryrx, Ho * Wo), dtype)
        out_spec = pl.BlockSpec((1, cblk * ryrx, hoblk * Wo),
                                lambda b, g, h: (b, g, h))
        out_blk = (_round_up(cblk * ryrx, sub)
                   * _round_up(hoblk * Wo, 128) * itemsize)
    else:
        out_shape = jax.ShapeDtypeStruct((B, C * ryrx, Ho, Wo), dtype)
        out_spec = pl.BlockSpec((1, cblk * ryrx, hoblk, Wo),
                                lambda b, g, h: (b, g, h, 0))
        out_blk = (cblk * ryrx * _round_up(hoblk, sub)
                   * _round_up(Wo, 128) * itemsize)
    in_blk = cblk * _round_up(hblk, sub) * _round_up(W, 128) * itemsize
    vmem_limit = 2 * (in_blk + out_blk) + 2 * sel_bytes + 8 * _MiB
    vmem_limit = int(min(_VMEM_LIMIT_CAP, max(_VMEM_LIMIT_FLOOR, vmem_limit)))

    kernel = {"copy_vec_flat": kernel_copy_vec,
              "copy_vec": kernel_copy_vec,
              "copy_unrolled": kernel_copy_unrolled,
              "row_strided": kernel_row_strided,
              "matmul": kernel_matmul}[mode]

    fn = pl.pallas_call(
        kernel,
        out_shape=out_shape,
        grid_spec=pltpu.PrefetchScalarGridSpec(
            num_scalar_prefetch=0,
            grid=(B, G, Hs),
            in_specs=in_specs,
            out_specs=out_spec,
        ),
        compiler_params=pltpu.CompilerParams(
            # All output blocks are disjoint -> every axis is parallel (shards
            # across v7x's 2 TCs; near-no-op on single-TC v5e/v6e).
            dimension_semantics=("parallel", "parallel", "parallel"),
            vmem_limit_bytes=vmem_limit,
        ),
        # Bandwidth-bound custom call: help XLA schedule neighbours around it.
        cost_estimate=pl.CostEstimate(flops=flops, transcendentals=0,
                                      bytes_accessed=2 * nbytes + 2 * sel_bytes),
    )
    extra = tuple(extra_args)

    def run(x):
        y = fn(x, *extra)
        if flat:
            y = y.reshape(B, C * ryrx, Ho, Wo)   # contiguous reshape: free
        return y

    return run


def pixel_unshuffle_ref(x, ry=2, rx=2):
    # Pure-JAX reference mirroring the PyTorch module exactly.
    B, C, H, W = x.shape
    x = x.reshape(B, C, H // ry, ry, W // rx, rx)
    x = jnp.transpose(x, (0, 1, 3, 5, 2, 4))
    return x.reshape(B, C * ry * rx, H // ry, W // rx)


def _select_runner(x, ry, rx):
    """Probe lowering modes once (compile + run + verify vs reference), return
    the jitted callable for the first/fastest mode that works."""
    shape, dtype = x.shape, x.dtype
    cblk, hoblk, flat_ok = _plan(shape, dtype, ry, rx)

    modes = (["copy_vec_flat"] if flat_ok else []) + ["copy_vec", "copy_unrolled"]
    if jnp.issubdtype(dtype, jnp.floating):
        # f32-accumulating MXU fallbacks are exact for floats (one-hot
        # selection) but not for wide integers -> ints never take these paths.
        modes += ["row_strided", "matmul"]

    y_ref = pixel_unshuffle_ref(x, ry, rx)
    equal_nan = bool(jnp.issubdtype(dtype, jnp.floating))
    last_err = None
    for i, mode in enumerate(modes):
        try:
            run = jax.jit(_build(shape, dtype, ry, rx, cblk, hoblk, mode))
            y = jax.block_until_ready(run(x))        # probe: compile + execute
            if not bool(jnp.array_equal(y, y_ref, equal_nan=equal_nan)):
                raise AssertionError("probe output mismatch vs reference")
            if i:
                warnings.warn(
                    "pixel_unshuffle: fell back to mode '%s' (preferred mode(s) "
                    "%s unavailable on this toolchain)" % (mode, modes[:i]))
            return run
        except Exception as e:                        # pltpu.LoweringException etc.
            last_err = e
            warnings.warn(
                "pixel_unshuffle: mode '%s' failed (%s: %s); trying next mode"
                % (mode, type(e).__name__, str(e)[:120]))
    raise last_err


_CACHE = {}


def pixel_unshuffle(x, ry=2, rx=2):
    B, C, H, W = x.shape
    if H % ry or W % rx:
        raise ValueError("spatial dims must be divisible by (ry, rx)")
    key = (tuple(x.shape), str(jnp.dtype(x.dtype)), int(ry), int(rx))
    run = _CACHE.get(key)
    if run is None:
        run = _select_runner(x, ry, rx)
        _CACHE[key] = run
    return run(x)


if __name__ == "__main__":
    key = jax.random.PRNGKey(0)
    x = jax.random.normal(key, (2, 4, 16, 16), dtype=jnp.float32)

    y = jax.block_until_ready(pixel_unshuffle(x, ry=2, rx=2))
    y_ref = pixel_unshuffle_ref(x, ry=2, rx=2)
    assert y.shape == y_ref.shape, (y.shape, y_ref.shape)
    assert jnp.array_equal(y, y_ref), "Pallas PixelUnshuffle mismatch vs reference"

    # Second call exercises the cached (jitted, no host sync besides this) path.
    y2 = jax.block_until_ready(pixel_unshuffle(x, ry=2, rx=2))
    assert jnp.array_equal(y2, y_ref)

    print("KERNEL_OK")
</pallas_src>

<mosaic_0001>
module attributes {stable_mosaic.version = 11 : i64} {
  func.func @kernel_copy_vec(%arg0: i32, %arg1: i32, %arg2: i32, %arg3: memref<1x4x16x16xf32, #tpu.memory_space<vmem>>, %arg4: memref<1x16x8x8xf32, #tpu.memory_space<vmem>>) attributes {dimension_semantics = [#tpu.dimension_semantics<parallel>, #tpu.dimension_semantics<parallel>, #tpu.dimension_semantics<parallel>], iteration_bounds = array<i64: 2, 1, 1>, scalar_prefetch = 0 : i64, scratch_operands = 0 : i64, tpu.core_type = #tpu.core_type<tc>, window_params = [{transform_indices = @transform_0, window_bounds = array<i64: 1, 4, 16, 16>}, {transform_indices = @transform_1, window_bounds = array<i64: 1, 16, 8, 8>}]} {
    %c0 = arith.constant 0 : index
    %c0_0 = arith.constant 0 : index
    %c0_1 = arith.constant 0 : index
    %c0_2 = arith.constant 0 : index
    %0 = tpu.strided_load %arg3[%c0, %c0_0, %c0_1, %c0_2] {strides = array<i32: 1, 1, 2, 2>} : memref<1x4x16x16xf32, #tpu.memory_space<vmem>>, vector<1x4x8x8xf32>
    %1 = vector.shape_cast %0 : vector<1x4x8x8xf32> to vector<4x8x8xf32>
    %c0_3 = arith.constant 0 : index
    %c0_4 = arith.constant 0 : index
    %c0_5 = arith.constant 0 : index
    %c0_6 = arith.constant 0 : index
    %2 = tpu.strided_load %arg4[%c0_3, %c0_4, %c0_5, %c0_6] {strides = array<i32: 1, 4, 1, 1>} : memref<1x16x8x8xf32, #tpu.memory_space<vmem>>, vector<1x4x8x8xf32>
    %3 = vector.shape_cast %2 : vector<1x4x8x8xf32> to vector<4x8x8xf32>
    %4 = vector.shape_cast %1 : vector<4x8x8xf32> to vector<1x4x8x8xf32>
    tpu.strided_store %arg4[%c0_3, %c0_4, %c0_5, %c0_6], %4 {strides = array<i32: 1, 4, 1, 1>} : memref<1x16x8x8xf32, #tpu.memory_space<vmem>>, vector<1x4x8x8xf32>
    %c0_7 = arith.constant 0 : index
    %c0_8 = arith.constant 0 : index
    %c0_9 = arith.constant 0 : index
    %c1 = arith.constant 1 : index
    %5 = tpu.strided_load %arg3[%c0_7, %c0_8, %c0_9, %c1] {strides = array<i32: 1, 1, 2, 2>} : memref<1x4x16x16xf32, #tpu.memory_space<vmem>>, vector<1x4x8x8xf32>
    %6 = vector.shape_cast %5 : vector<1x4x8x8xf32> to vector<4x8x8xf32>
    %c0_10 = arith.constant 0 : index
    %c1_11 = arith.constant 1 : index
    %c0_12 = arith.constant 0 : index
    %c0_13 = arith.constant 0 : index
    %7 = tpu.strided_load %arg4[%c0_10, %c1_11, %c0_12, %c0_13] {strides = array<i32: 1, 4, 1, 1>} : memref<1x16x8x8xf32, #tpu.memory_space<vmem>>, vector<1x4x8x8xf32>
    %8 = vector.shape_cast %7 : vector<1x4x8x8xf32> to vector<4x8x8xf32>
    %9 = vector.shape_cast %6 : vector<4x8x8xf32> to vector<1x4x8x8xf32>
    tpu.strided_store %arg4[%c0_10, %c1_11, %c0_12, %c0_13], %9 {strides = array<i32: 1, 4, 1, 1>} : memref<1x16x8x8xf32, #tpu.memory_space<vmem>>, vector<1x4x8x8xf32>
    %c0_14 = arith.constant 0 : index
    %c0_15 = arith.constant 0 : index
    %c1_16 = arith.constant 1 : index
    %c0_17 = arith.constant 0 : index
    %10 = tpu.strided_load %arg3[%c0_14, %c0_15, %c1_16, %c0_17] {strides = array<i32: 1, 1, 2, 2>} : memref<1x4x16x16xf32, #tpu.memory_space<vmem>>, vector<1x4x8x8xf32>
    %11 = vector.shape_cast %10 : vector<1x4x8x8xf32> to vector<4x8x8xf32>
    %c0_18 = arith.constant 0 : index
    %c2 = arith.constant 2 : index
    %c0_19 = arith.constant 0 : index
    %c0_20 = arith.constant 0 : index
    %12 = tpu.strided_load %arg4[%c0_18, %c2, %c0_19, %c0_20] {strides = array<i32: 1, 4, 1, 1>} : memref<1x16x8x8xf32, #tpu.memory_space<vmem>>, vector<1x4x8x8xf32>
    %13 = vector.shape_cast %12 : vector<1x4x8x8xf32> to vector<4x8x8xf32>
    %14 = vector.shape_cast %11 : vector<4x8x8xf32> to vector<1x4x8x8xf32>
    tpu.strided_store %arg4[%c0_18, %c2, %c0_19, %c0_20], %14 {strides = array<i32: 1, 4, 1, 1>} : memref<1x16x8x8xf32, #tpu.memory_space<vmem>>, vector<1x4x8x8xf32>
    %c0_21 = arith.constant 0 : index
    %c0_22 = arith.constant 0 : index
    %c1_23 = arith.constant 1 : index
    %c1_24 = arith.constant 1 : index
    %15 = tpu.strided_load %arg3[%c0_21, %c0_22, %c1_23, %c1_24] {strides = array<i32: 1, 1, 2, 2>} : memref<1x4x16x16xf32, #tpu.memory_space<vmem>>, vector<1x4x8x8xf32>
    %16 = vector.shape_cast %15 : vector<1x4x8x8xf32> to vector<4x8x8xf32>
    %c0_25 = arith.constant 0 : index
    %c3 = arith.constant 3 : index
    %c0_26 = arith.constant 0 : index
    %c0_27 = arith.constant 0 : index
    %17 = tpu.strided_load %arg4[%c0_25, %c3, %c0_26, %c0_27] {strides = array<i32: 1, 4, 1, 1>} : memref<1x16x8x8xf32, #tpu.memory_space<vmem>>, vector<1x4x8x8xf32>
    %18 = vector.shape_cast %17 : vector<1x4x8x8xf32> to vector<4x8x8xf32>
    %19 = vector.shape_cast %16 : vector<4x8x8xf32> to vector<1x4x8x8xf32>
    tpu.strided_store %arg4[%c0_25, %c3, %c0_26, %c0_27], %19 {strides = array<i32: 1, 4, 1, 1>} : memref<1x16x8x8xf32, #tpu.memory_space<vmem>>, vector<1x4x8x8xf32>
    return
  }
  func.func @transform_0(%arg0: i32, %arg1: i32, %arg2: i32) -> (i32, i32, i32, i32) {
    %c0_i32 = arith.constant 0 : i32
    %c0_i32_0 = arith.constant 0 : i32
    return %arg0, %arg1, %arg2, %c0_i32 : i32, i32, i32, i32
  }
  func.func @transform_1(%arg0: i32, %arg1: i32, %arg2: i32) -> (i32, i32, i32, i32) {
    %c0_i32 = arith.constant 0 : i32
    %c0_i32_0 = arith.constant 0 : i32
    return %arg0, %arg1, %arg2, %c0_i32 : i32, i32, i32, i32
  }
}

module attributes {stable_mosaic.version = 11 : i64} {
  func.func @kernel_copy_unrolled(%arg0: i32, %arg1: i32, %arg2: i32, %arg3: memref<1x4x16x16xf32, #tpu.memory_space<vmem>>, %arg4: memref<1x16x8x8xf32, #tpu.memory_space<vmem>>) attributes {dimension_semantics = [#tpu.dimension_semantics<parallel>, #tpu.dimension_semantics<parallel>, #tpu.dimension_semantics<parallel>], iteration_bounds = array<i64: 2, 1, 1>, scalar_prefetch = 0 : i64, scratch_operands = 0 : i64, tpu.core_type = #tpu.core_type<tc>, window_params = [{transform_indices = @transform_0, window_bounds = array<i64: 1, 4, 16, 16>}, {transform_indices = @transform_1, window_bounds = array<i64: 1, 16, 8, 8>}]} {
    %c0 = arith.constant 0 : index
    %c0_0 = arith.constant 0 : index
    %c0_1 = arith.constant 0 : index
    %c0_2 = arith.constant 0 : index
    %0 = tpu.strided_load %arg3[%c0, %c0_0, %c0_1, %c0_2] {strides = array<i32: 1, 1, 2, 2>} : memref<1x4x16x16xf32, #tpu.memory_space<vmem>>, vector<1x1x8x8xf32>
    %1 = vector.shape_cast %0 : vector<1x1x8x8xf32> to vector<8x8xf32>
    %c0_3 = arith.constant 0 : index
    %c0_4 = arith.constant 0 : index
    %c0_5 = arith.constant 0 : index
    %c0_6 = arith.constant 0 : index
    %2 = vector.load %arg4[%c0_3, %c0_4, %c0_5, %c0_6] : memref<1x16x8x8xf32, #tpu.memory_space<vmem>>, vector<1x1x8x8xf32>
    %3 = vector.shape_cast %2 : vector<1x1x8x8xf32> to vector<8x8xf32>
    %4 = vector.shape_cast %1 : vector<8x8xf32> to vector<1x1x8x8xf32>
    tpu.vector_store %arg4[%c0_3, %c0_4, %c0_5, %c0_6], %4 {strides = array<i32>} : memref<1x16x8x8xf32, #tpu.memory_space<vmem>>, vector<1x1x8x8xf32>,
    %c0_7 = arith.constant 0 : index
    %c0_8 = arith.constant 0 : index
    %c0_9 = arith.constant 0 : index
    %c1 = arith.constant 1 : index
    %5 = tpu.strided_load %arg3[%c0_7, %c0_8, %c0_9, %c1] {strides = array<i32: 1, 1, 2, 2>} : memref<1x4x16x16xf32, #tpu.memory_space<vmem>>, vector<1x1x8x8xf32>
    %6 = vector.shape_cast %5 : vector<1x1x8x8xf32> to vector<8x8xf32>
    %c0_10 = arith.constant 0 : index
    %c1_11 = arith.constant 1 : index
    %c0_12 = arith.constant 0 : index
    %c0_13 = arith.constant 0 : index
    %7 = vector.load %arg4[%c0_10, %c1_11, %c0_12, %c0_13] : memref<1x16x8x8xf32, #tpu.memory_space<vmem>>, vector<1x1x8x8xf32>
    %8 = vector.shape_cast %7 : vector<1x1x8x8xf32> to vector<8x8xf32>
    %9 = vector.shape_cast %6 : vector<8x8xf32> to vector<1x1x8x8xf32>
    tpu.vector_store %arg4[%c0_10, %c1_11, %c0_12, %c0_13], %9 {strides = array<i32>} : memref<1x16x8x8xf32, #tpu.memory_space<vmem>>, vector<1x1x8x8xf32>,
    %c0_14 = arith.constant 0 : index
    %c0_15 = arith.constant 0 : index
    %c1_16 = arith.constant 1 : index
    %c0_17 = arith.constant 0 : index
    %10 = tpu.strided_load %arg3[%c0_14, %c0_15, %c1_16, %c0_17] {strides = array<i32: 1, 1, 2, 2>} : memref<1x4x16x16xf32, #tpu.memory_space<vmem>>, vector<1x1x8x8xf32>
    %11 = vector.shape_cast %10 : vector<1x1x8x8xf32> to vector<8x8xf32>
    %c0_18 = arith.constant 0 : index
    %c2 = arith.constant 2 : index
    %c0_19 = arith.constant 0 : index
    %c0_20 = arith.constant 0 : index
    %12 = vector.load %arg4[%c0_18, %c2, %c0_19, %c0_20] : memref<1x16x8x8xf32, #tpu.memory_space<vmem>>, vector<1x1x8x8xf32>
    %13 = vector.shape_cast %12 : vector<1x1x8x8xf32> to vector<8x8xf32>
    %14 = vector.shape_cast %11 : vector<8x8xf32> to vector<1x1x8x8xf32>
    tpu.vector_store %arg4[%c0_18, %c2, %c0_19, %c0_20], %14 {strides = array<i32>} : memref<1x16x8x8xf32, #tpu.memory_space<vmem>>, vector<1x1x8x8xf32>,
    %c0_21 = arith.constant 0 : index
    %c0_22 = arith.constant 0 : index
    %c1_23 = arith.constant 1 : index
    %c1_24 = arith.constant 1 : index
    %15 = tpu.strided_load %arg3[%c0_21, %c0_22, %c1_23, %c1_24] {strides = array<i32: 1, 1, 2, 2>} : memref<1x4x16x16xf32, #tpu.memory_space<vmem>>, vector<1x1x8x8xf32>
    %16 = vector.shape_cast %15 : vector<1x1x8x8xf32> to vector<8x8xf32>
    %c0_25 = arith.constant 0 : index
    %c3 = arith.constant 3 : index
    %c0_26 = arith.constant 0 : index
    %c0_27 = arith.constant 0 : index
    %17 = vector.load %arg4[%c0_25, %c3, %c0_26, %c0_27] : memref<1x16x8x8xf32, #tpu.memory_space<vmem>>, vector<1x1x8x8xf32>
    %18 = vector.shape_cast %17 : vector<1x1x8x8xf32> to vector<8x8xf32>
    %19 = vector.shape_cast %16 : vector<8x8xf32> to vector<1x1x8x8xf32>
    tpu.vector_store %arg4[%c0_25, %c3, %c0_26, %c0_27], %19 {strides = array<i32>} : memref<1x16x8x8xf32, #tpu.memory_space<vmem>>, vector<1x1x8x8xf32>,
    %c0_28 = arith.constant 0 : index
    %c1_29 = arith.constant 1 : index
    %c0_30 = arith.constant 0 : index
    %c0_31 = arith.constant 0 : index
    %20 = tpu.strided_load %arg3[%c0_28, %c1_29, %c0_30, %c0_31] {strides = array<i32: 1, 1, 2, 2>} : memref<1x4x16x16xf32, #tpu.memory_space<vmem>>, vector<1x1x8x8xf32>
    %21 = vector.shape_cast %20 : vector<1x1x8x8xf32> to vector<8x8xf32>
    %c0_32 = arith.constant 0 : index
    %c4 = arith.constant 4 : index
    %c0_33 = arith.constant 0 : index
    %c0_34 = arith.constant 0 : index
    %22 = vector.load %arg4[%c0_32, %c4, %c0_33, %c0_34] : memref<1x16x8x8xf32, #tpu.memory_space<vmem>>, vector<1x1x8x8xf32>
    %23 = vector.shape_cast %22 : vector<1x1x8x8xf32> to vector<8x8xf32>
    %24 = vector.shape_cast %21 : vector<8x8xf32> to vector<1x1x8x8xf32>
    tpu.vector_store %arg4[%c0_32, %c4, %c0_33, %c0_34], %24 {strides = array<i32>} : memref<1x16x8x8xf32, #tpu.memory_space<vmem>>, vector<1x1x8x8xf32>,
    %c0_35 = arith.constant 0 : index
    %c1_36 = arith.constant 1 : index
    %c0_37 = arith.constant 0 : index
    %c1_38 = arith.constant 1 : index
    %25 = tpu.strided_load %arg3[%c0_35, %c1_36, %c0_37, %c1_38] {strides = array<i32: 1, 1, 2, 2>} : memref<1x4x16x16xf32, #tpu.memory_space<vmem>>, vector<1x1x8x8xf32>
    %26 = vector.shape_cast %25 : vector<1x1x8x8xf32> to vector<8x8xf32>
    %c0_39 = arith.constant 0 : index
    %c5 = arith.constant 5 : index
    %c0_40 = arith.constant 0 : index
    %c0_41 = arith.constant 0 : index
    %27 = vector.load %arg4[%c0_39, %c5, %c0_40, %c0_41] : memref<1x16x8x8xf32, #tpu.memory_space<vmem>>, vector<1x1x8x8xf32>
    %28 = vector.shape_cast %27 : vector<1x1x8x8xf32> to vector<8x8xf32>
    %29 = vector.shape_cast %26 : vector<8x8xf32> to vector<1x1x8x8xf32>
    tpu.vector_store %arg4[%c0_39, %c5, %c0_40, %c0_41], %29 {strides = array<i32>} : memref<1x16x8x8xf32, #tpu.memory_space<vmem>>, vector<1x1x8x8xf32>,
    %c0_42 = arith.constant 0 : index
    %c1_43 = arith.constant 1 : index
    %c1_44 = arith.constant 1 : index
    %c0_45 = arith.constant 0 : index
    %30 = tpu.strided_load %arg3[%c0_42, %c1_43, %c1_44, %c0_45] {strides = array<i32: 1, 1, 2, 2>} : memref<1x4x16x16xf32, #tpu.memory_space<vmem>>, vector<1x1x8x8xf32>
    %31 = vector.shape_cast %30 : vector<1x1x8x8xf32> to vector<8x8xf32>
    %c0_46 = arith.constant 0 : index
    %c6 = arith.constant 6 : index
    %c0_47 = arith.constant 0 : index
    %c0_48 = arith.constant 0 : index
    %32 = vector.load %arg4[%c0_46, %c6, %c0_47, %c0_48] : memref<1x16x8x8xf32, #tpu.memory_space<vmem>>, vector<1x1x8x8xf32>
    %33 = vector.shape_cast %32 : vector<1x1x8x8xf32> to vector<8x8xf32>
    %34 = vector.shape_cast %31 : vector<8x8xf32> to vector<1x1x8x8xf32>
    tpu.vector_store %arg4[%c0_46, %c6, %c0_47, %c0_48], %34 {strides = array<i32>} : memref<1x16x8x8xf32, #tpu.memory_space<vmem>>, vector<1x1x8x8xf32>,
    %c0_49 = arith.constant 0 : index
    %c1_50 = arith.constant 1 : index
    %c1_51 = arith.constant 1 : index
    %c1_52 = arith.constant 1 : index
    %35 = tpu.strided_load %arg3[%c0_49, %c1_50, %c1_51, %c1_52] {strides = array<i32: 1, 1, 2, 2>} : memref<1x4x16x16xf32, #tpu.memory_space<vmem>>, vector<1x1x8x8xf32>
    %36 = vector.shape_cast %35 : vector<1x1x8x8xf32> to vector<8x8xf32>
    %c0_53 = arith.constant 0 : index
    %c7 = arith.constant 7 : index
    %c0_54 = arith.constant 0 : index
    %c0_55 = arith.constant 0 : index
    %37 = vector.load %arg4[%c0_53, %c7, %c0_54, %c0_55] : memref<1x16x8x8xf32, #tpu.memory_space<vmem>>, vector<1x1x8x8xf32>
    %38 = vector.shape_cast %37 : vector<1x1x8x8xf32> to vector<8x8xf32>
    %39 = vector.shape_cast %36 : vector<8x8xf32> to vector<1x1x8x8xf32>
    tpu.vector_store %arg4[%c0_53, %c7, %c0_54, %c0_55], %39 {strides = array<i32>} : memref<1x16x8x8xf32, #tpu.memory_space<vmem>>, vector<1x1x8x8xf32>,
    %c0_56 = arith.constant 0 : index
    %c2_57 = arith.constant 2 : index
    %c0_58 = arith.constant 0 : index
    %c0_59 = arith.constant 0 : index
    %40 = tpu.strided_load %arg3[%c0_56, %c2_57, %c0_58, %c0_59] {strides = array<i32: 1, 1, 2, 2>} : memref<1x4x16x16xf32, #tpu.memory_space<vmem>>, vector<1x1x8x8xf32>
    %41 = vector.shape_cast %40 : vector<1x1x8x8xf32> to vector<8x8xf32>
    %c0_60 = arith.constant 0 : index
    %c8 = arith.constant 8 : index
    %c0_61 = arith.constant 0 : index
    %c0_62 = arith.constant 0 : index
    %42 = vector.load %arg4[%c0_60, %c8, %c0_61, %c0_62] : memref<1x16x8x8xf32, #tpu.memory_space<vmem>>, vector<1x1x8x8xf32>
    %43 = vector.shape_cast %42 : vector<1x1x8x8xf32> to vector<8x8xf32>
    %44 = vector.shape_cast %41 : vector<8x8xf32> to vector<1x1x8x8xf32>
    tpu.vector_store %arg4[%c0_60, %c8, %c0_61, %c0_62], %44 {strides = array<i32>} : memref<1x16x8x8xf32, #tpu.memory_space<vmem>>, vector<1x1x8x8xf32>,
    %c0_63 = arith.constant 0 : index
    %c2_64 = arith.constant 2 : index
    %c0_65 = arith.constant 0 : index
    %c1_66 = arith.constant 1 : index
    %45 = tpu.strided_load %arg3[%c0_63, %c2_64, %c0_65, %c1_66] {strides = array<i32: 1, 1, 2, 2>} : memref<1x4x16x16xf32, #tpu.memory_space<vmem>>, vector<1x1x8x8xf32>
    %46 = vector.shape_cast %45 : vector<1x1x8x8xf32> to vector<8x8xf32>
    %c0_67 = arith.constant 0 : index
    %c9 = arith.constant 9 : index
    %c0_68 = arith.constant 0 : index
    %c0_69 = arith.constant 0 : index
    %47 = vector.load %arg4[%c0_67, %c9, %c0_68, %c0_69] : memref<1x16x8x8xf32, #tpu.memory_space<vmem>>, vector<1x1x8x8xf32>
    %48 = vector.shape_cast %47 : vector<1x1x8x8xf32> to vector<8x8xf32>
    %49 = vector.shape_cast %46 : vector<8x8xf32> to vector<1x1x8x8xf32>
    tpu.vector_store %arg4[%c0_67, %c9, %c0_68, %c0_69], %49 {strides = array<i32>} : memref<1x16x8x8xf32, #tpu.memory_space<vmem>>, vector<1x1x8x8xf32>,
    %c0_70 = arith.constant 0 : index
    %c2_71 = arith.constant 2 : index
    %c1_72 = arith.constant 1 : index
    %c0_73 = arith.constant 0 : index
    %50 = tpu.strided_load %arg3[%c0_70, %c2_71, %c1_72, %c0_73] {strides = array<i32: 1, 1, 2, 2>} : memref<1x4x16x16xf32, #tpu.memory_space<vmem>>, vector<1x1x8x8xf32>
    %51 = vector.shape_cast %50 : vector<1x1x8x8xf32> to vector<8x8xf32>
    %c0_74 = arith.constant 0 : index
    %c10 = arith.constant 10 : index
    %c0_75 = arith.constant 0 : index
    %c0_76 = arith.constant 0 : index
    %52 = vector.load %arg4[%c0_74, %c10, %c0_75, %c0_76] : memref<1x16x8x8xf32, #tpu.memory_space<vmem>>, vector<1x1x8x8xf32>
    %53 = vector.shape_cast %52 : vector<1x1x8x8xf32> to vector<8x8xf32>
    %54 = vector.shape_cast %51 : vector<8x8xf32> to vector<1x1x8x8xf32>
    tpu.vector_store %arg4[%c0_74, %c10, %c0_75, %c0_76], %54 {strides = array<i32>} : memref<1x16x8x8xf32, #tpu.memory_space<vmem>>, vector<1x1x8x8xf32>,
    %c0_77 = arith.constant 0 : index
    %c2_78 = arith.constant 2 : index
    %c1_79 = arith.constant 1 : index
    %c1_80 = arith.constant 1 : index
    %55 = tpu.strided_load %arg3[%c0_77, %c2_78, %c1_79, %c1_80] {strides = array<i32: 1, 1, 2, 2>} : memref<1x4x16x16xf32, #tpu.memory_space<vmem>>, vector<1x1x8x8xf32>
    %56 = vector.shape_cast %55 : vector<1x1x8x8xf32> to vector<8x8xf32>
    %c0_81 = arith.constant 0 : index
    %c11 = arith.constant 11 : index
    %c0_82 = arith.constant 0 : index
    %c0_83 = arith.constant 0 : index
    %57 = vector.load %arg4[%c0_81, %c11, %c0_82, %c0_83] : memref<1x16x8x8xf32, #tpu.memory_space<vmem>>, vector<1x1x8x8xf32>
    %58 = vector.shape_cast %57 : vector<1x1x8x8xf32> to vector<8x8xf32>
    %59 = vector.shape_cast %56 : vector<8x8xf32> to vector<1x1x8x8xf32>
    tpu.vector_store %arg4[%c0_81, %c11, %c0_82, %c0_83], %59 {strides = array<i32>} : memref<1x16x8x8xf32, #tpu.memory_space<vmem>>, vector<1x1x8x8xf32>,
    %c0_84 = arith.constant 0 : index
    %c3_85 = arith.constant 3 : index
    %c0_86 = arith.constant 0 : index
    %c0_87 = arith.constant 0 : index
    %60 = tpu.strided_load %arg3[%c0_84, %c3_85, %c0_86, %c0_87] {strides = array<i32: 1, 1, 2, 2>} : memref<1x4x16x16xf32, #tpu.memory_space<vmem>>, vector<1x1x8x8xf32>
    %61 = vector.shape_cast %60 : vector<1x1x8x8xf32> to vector<8x8xf32>
    %c0_88 = arith.constant 0 : index
    %c12 = arith.constant 12 : index
    %c0_89 = arith.constant 0 : index
    %c0_90 = arith.constant 0 : index
    %62 = vector.load %arg4[%c0_88, %c12, %c0_89, %c0_90] : memref<1x16x8x8xf32, #tpu.memory_space<vmem>>, vector<1x1x8x8xf32>
    %63 = vector.shape_cast %62 : vector<1x1x8x8xf32> to vector<8x8xf32>
    %64 = vector.shape_cast %61 : vector<8x8xf32> to vector<1x1x8x8xf32>
    tpu.vector_store %arg4[%c0_88, %c12, %c0_89, %c0_90], %64 {strides = array<i32>} : memref<1x16x8x8xf32, #tpu.memory_space<vmem>>, vector<1x1x8x8xf32>,
    %c0_91 = arith.constant 0 : index
    %c3_92 = arith.constant 3 : index
    %c0_93 = arith.constant 0 : index
    %c1_94 = arith.constant 1 : index
    %65 = tpu.strided_load %arg3[%c0_91, %c3_92, %c0_93, %c1_94] {strides = array<i32: 1, 1, 2, 2>} : memref<1x4x16x16xf32, #tpu.memory_space<vmem>>, vector<1x1x8x8xf32>
    %66 = vector.shape_cast %65 : vector<1x1x8x8xf32> to vector<8x8xf32>
    %c0_95 = arith.constant 0 : index
    %c13 = arith.constant 13 : index
    %c0_96 = arith.constant 0 : index
    %c0_97 = arith.constant 0 : index
    %67 = vector.load %arg4[%c0_95, %c13, %c0_96, %c0_97] : memref<1x16x8x8xf32, #tpu.memory_space<vmem>>, vector<1x1x8x8xf32>
    %68 = vector.shape_cast %67 : vector<1x1x8x8xf32> to vector<8x8xf32>
    %69 = vector.shape_cast %66 : vector<8x8xf32> to vector<1x1x8x8xf32>
    tpu.vector_store %arg4[%c0_95, %c13, %c0_96, %c0_97], %69 {strides = array<i32>} : memref<1x16x8x8xf32, #tpu.memory_space<vmem>>, vector<1x1x8x8xf32>,
    %c0_98 = arith.constant 0 : index
    %c3_99 = arith.constant 3 : index
    %c1_100 = arith.constant 1 : index
    %c0_101 = arith.constant 0 : index
    %70 = tpu.strided_load %arg3[%c0_98, %c3_99, %c1_100, %c0_101] {strides = array<i32: 1, 1, 2, 2>} : memref<1x4x16x16xf32, #tpu.memory_space<vmem>>, vector<1x1x8x8xf32>
    %71 = vector.shape_cast %70 : vector<1x1x8x8xf32> to vector<8x8xf32>
    %c0_102 = arith.constant 0 : index
    %c14 = arith.constant 14 : index
    %c0_103 = arith.constant 0 : index
    %c0_104 = arith.constant 0 : index
    %72 = vector.load %arg4[%c0_102, %c14, %c0_103, %c0_104] : memref<1x16x8x8xf32, #tpu.memory_space<vmem>>, vector<1x1x8x8xf32>
    %73 = vector.shape_cast %72 : vector<1x1x8x8xf32> to vector<8x8xf32>
    %74 = vector.shape_cast %71 : vector<8x8xf32> to vector<1x1x8x8xf32>
    tpu.vector_store %arg4[%c0_102, %c14, %c0_103, %c0_104], %74 {strides = array<i32>} : memref<1x16x8x8xf32, #tpu.memory_space<vmem>>, vector<1x1x8x8xf32>,
    %c0_105 = arith.constant 0 : index
    %c3_106 = arith.constant 3 : index
    %c1_107 = arith.constant 1 : index
    %c1_108 = arith.constant 1 : index
    %75 = tpu.strided_load %arg3[%c0_105, %c3_106, %c1_107, %c1_108] {strides = array<i32: 1, 1, 2, 2>} : memref<1x4x16x16xf32, #tpu.memory_space<vmem>>, vector<1x1x8x8xf32>
    %76 = vector.shape_cast %75 : vector<1x1x8x8xf32> to vector<8x8xf32>
    %c0_109 = arith.constant 0 : index
    %c15 = arith.constant 15 : index
    %c0_110 = arith.constant 0 : index
    %c0_111 = arith.constant 0 : index
    %77 = vector.load %arg4[%c0_109, %c15, %c0_110, %c0_111] : memref<1x16x8x8xf32, #tpu.memory_space<vmem>>, vector<1x1x8x8xf32>
    %78 = vector.shape_cast %77 : vector<1x1x8x8xf32> to vector<8x8xf32>
    %79 = vector.shape_cast %76 : vector<8x8xf32> to vector<1x1x8x8xf32>
    tpu.vector_store %arg4[%c0_109, %c15, %c0_110, %c0_111], %79 {strides = array<i32>} : memref<1x16x8x8xf32, #tpu.memory_space<vmem>>, vector<1x1x8x8xf32>,
    return
  }
  func.func @transform_0(%arg0: i32, %arg1: i32, %arg2: i32) -> (i32, i32, i32, i32) {
    %c0_i32 = arith.constant 0 : i32
    %c0_i32_0 = arith.constant 0 : i32
    return %arg0, %arg1, %arg2, %c0_i32 : i32, i32, i32, i32
  }
  func.func @transform_1(%arg0: i32, %arg1: i32, %arg2: i32) -> (i32, i32, i32, i32) {
    %c0_i32 = arith.constant 0 : i32
    %c0_i32_0 = arith.constant 0 : i32
    return %arg0, %arg1, %arg2, %c0_i32 : i32, i32, i32, i32
  }
}

module attributes {stable_mosaic.version = 11 : i64} {
  func.func @kernel_row_strided(%arg0: i32, %arg1: i32, %arg2: i32, %arg3: memref<1x4x16x16xf32, #tpu.memory_space<vmem>>, %arg4: memref<16x16xf32, #tpu.memory_space<vmem>>, %arg5: memref<1x16x8x8xf32, #tpu.memory_space<vmem>>) attributes {dimension_semantics = [#tpu.dimension_semantics<parallel>, #tpu.dimension_semantics<parallel>, #tpu.dimension_semantics<parallel>], iteration_bounds = array<i64: 2, 1, 1>, scalar_prefetch = 0 : i64, scratch_operands = 0 : i64, tpu.core_type = #tpu.core_type<tc>, window_params = [{transform_indices = @transform_0, window_bounds = array<i64: 1, 4, 16, 16>}, {pipeline_mode = #tpu.pipeline_mode<synchronous>, transform_indices = @transform_1, window_bounds = array<i64: 16, 16>}, {transform_indices = @transform_2, window_bounds = array<i64: 1, 16, 8, 8>}]} {
    %c0 = arith.constant 0 : index
    %c0_0 = arith.constant 0 : index
    %c0_1 = arith.constant 0 : index
    %c0_2 = arith.constant 0 : index
    %0 = tpu.strided_load %arg3[%c0, %c0_0, %c0_1, %c0_2] {strides = array<i32: 1, 1, 2, 1>} : memref<1x4x16x16xf32, #tpu.memory_space<vmem>>, vector<1x4x8x16xf32>
    %1 = vector.shape_cast %0 : vector<1x4x8x16xf32> to vector<4x8x16xf32>
    %2 = vector.shape_cast %1 : vector<4x8x16xf32> to vector<32x16xf32>
    %c0_3 = arith.constant 0 : index
    %c0_4 = arith.constant 0 : index
    %3 = vector.load %arg4[%c0_3, %c0_4] : memref<16x16xf32, #tpu.memory_space<vmem>>, vector<16x16xf32>
    %cst = arith.constant dense<0.000000e+00> : vector<32x16xf32>
    %4 = tpu.matmul %2, %3, %cst {dimension_numbers = #tpu.dot_dimension_numbers<[1], [0], [0], [1], [0, 0, 1, 1], [], []>} : vector<32x16xf32>, vector<16x16xf32>, vector<32x16xf32> -> vector<32x16xf32>
    %5 = vector.shape_cast %4 : vector<32x16xf32> to vector<4x8x16xf32>
    %6 = vector.extract_strided_slice %5 {offsets = [0, 0, 0], sizes = [4, 8, 8], strides = [1, 1, 1]} : vector<4x8x16xf32> to vector<4x8x8xf32>
    %c0_5 = arith.constant 0 : index
    %c0_6 = arith.constant 0 : index
    %c0_7 = arith.constant 0 : index
    %c0_8 = arith.constant 0 : index
    %7 = tpu.strided_load %arg5[%c0_5, %c0_6, %c0_7, %c0_8] {strides = array<i32: 1, 4, 1, 1>} : memref<1x16x8x8xf32, #tpu.memory_space<vmem>>, vector<1x4x8x8xf32>
    %8 = vector.shape_cast %7 : vector<1x4x8x8xf32> to vector<4x8x8xf32>
    %9 = vector.shape_cast %6 : vector<4x8x8xf32> to vector<1x4x8x8xf32>
    tpu.strided_store %arg5[%c0_5, %c0_6, %c0_7, %c0_8], %9 {strides = array<i32: 1, 4, 1, 1>} : memref<1x16x8x8xf32, #tpu.memory_space<vmem>>, vector<1x4x8x8xf32>
    %10 = vector.extract_strided_slice %5 {offsets = [0, 0, 8], sizes = [4, 8, 8], strides = [1, 1, 1]} : vector<4x8x16xf32> to vector<4x8x8xf32>
    %c0_9 = arith.constant 0 : index
    %c1 = arith.constant 1 : index
    %c0_10 = arith.constant 0 : index
    %c0_11 = arith.constant 0 : index
    %11 = tpu.strided_load %arg5[%c0_9, %c1, %c0_10, %c0_11] {strides = array<i32: 1, 4, 1, 1>} : memref<1x16x8x8xf32, #tpu.memory_space<vmem>>, vector<1x4x8x8xf32>
    %12 = vector.shape_cast %11 : vector<1x4x8x8xf32> to vector<4x8x8xf32>
    %13 = vector.shape_cast %10 : vector<4x8x8xf32> to vector<1x4x8x8xf32>
    tpu.strided_store %arg5[%c0_9, %c1, %c0_10, %c0_11], %13 {strides = array<i32: 1, 4, 1, 1>} : memref<1x16x8x8xf32, #tpu.memory_space<vmem>>, vector<1x4x8x8xf32>
    %c0_12 = arith.constant 0 : index
    %c0_13 = arith.constant 0 : index
    %c1_14 = arith.constant 1 : index
    %c0_15 = arith.constant 0 : index
    %14 = tpu.strided_load %arg3[%c0_12, %c0_13, %c1_14, %c0_15] {strides = array<i32: 1, 1, 2, 1>} : memref<1x4x16x16xf32, #tpu.memory_space<vmem>>, vector<1x4x8x16xf32>
    %15 = vector.shape_cast %14 : vector<1x4x8x16xf32> to vector<4x8x16xf32>
    %16 = vector.shape_cast %15 : vector<4x8x16xf32> to vector<32x16xf32>
    %c0_16 = arith.constant 0 : index
    %c0_17 = arith.constant 0 : index
    %17 = vector.load %arg4[%c0_16, %c0_17] : memref<16x16xf32, #tpu.memory_space<vmem>>, vector<16x16xf32>
    %cst_18 = arith.constant dense<0.000000e+00> : vector<32x16xf32>
    %18 = tpu.matmul %16, %17, %cst_18 {dimension_numbers = #tpu.dot_dimension_numbers<[1], [0], [0], [1], [0, 0, 1, 1], [], []>} : vector<32x16xf32>, vector<16x16xf32>, vector<32x16xf32> -> vector<32x16xf32>
    %19 = vector.shape_cast %18 : vector<32x16xf32> to vector<4x8x16xf32>
    %20 = vector.extract_strided_slice %19 {offsets = [0, 0, 0], sizes = [4, 8, 8], strides = [1, 1, 1]} : vector<4x8x16xf32> to vector<4x8x8xf32>
    %c0_19 = arith.constant 0 : index
    %c2 = arith.constant 2 : index
    %c0_20 = arith.constant 0 : index
    %c0_21 = arith.constant 0 : index
    %21 = tpu.strided_load %arg5[%c0_19, %c2, %c0_20, %c0_21] {strides = array<i32: 1, 4, 1, 1>} : memref<1x16x8x8xf32, #tpu.memory_space<vmem>>, vector<1x4x8x8xf32>
    %22 = vector.shape_cast %21 : vector<1x4x8x8xf32> to vector<4x8x8xf32>
    %23 = vector.shape_cast %20 : vector<4x8x8xf32> to vector<1x4x8x8xf32>
    tpu.strided_store %arg5[%c0_19, %c2, %c0_20, %c0_21], %23 {strides = array<i32: 1, 4, 1, 1>} : memref<1x16x8x8xf32, #tpu.memory_space<vmem>>, vector<1x4x8x8xf32>
    %24 = vector.extract_strided_slice %19 {offsets = [0, 0, 8], sizes = [4, 8, 8], strides = [1, 1, 1]} : vector<4x8x16xf32> to vector<4x8x8xf32>
    %c0_22 = arith.constant 0 : index
    %c3 = arith.constant 3 : index
    %c0_23 = arith.constant 0 : index
    %c0_24 = arith.constant 0 : index
    %25 = tpu.strided_load %arg5[%c0_22, %c3, %c0_23, %c0_24] {strides = array<i32: 1, 4, 1, 1>} : memref<1x16x8x8xf32, #tpu.memory_space<vmem>>, vector<1x4x8x8xf32>
    %26 = vector.shape_cast %25 : vector<1x4x8x8xf32> to vector<4x8x8xf32>
    %27 = vector.shape_cast %24 : vector<4x8x8xf32> to vector<1x4x8x8xf32>
    tpu.strided_store %arg5[%c0_22, %c3, %c0_23, %c0_24], %27 {strides = array<i32: 1, 4, 1, 1>} : memref<1x16x8x8xf32, #tpu.memory_space<vmem>>, vector<1x4x8x8xf32>
    return
  }
  func.func @transform_0(%arg0: i32, %arg1: i32, %arg2: i32) -> (i32, i32, i32, i32) {
    %c0_i32 = arith.constant 0 : i32
    %c0_i32_0 = arith.constant 0 : i32
    return %arg0, %arg1, %arg2, %c0_i32 : i32, i32, i32, i32
  }
  func.func @transform_1(%arg0: i32, %arg1: i32, %arg2: i32) -> (i32, i32) {
    %c0_i32 = arith.constant 0 : i32
    %c0_i32_0 = arith.constant 0 : i32
    %c0_i32_1 = arith.constant 0 : i32
    return %c0_i32, %c0_i32_0 : i32, i32
  }
  func.func @transform_2(%arg0: i32, %arg1: i32, %arg2: i32) -> (i32, i32, i32, i32) {
    %c0_i32 = arith.constant 0 : i32
    %c0_i32_0 = arith.constant 0 : i32
    return %arg0, %arg1, %arg2, %c0_i32 : i32, i32, i32, i32
  }
}

module attributes {stable_mosaic.version = 11 : i64} {
  func.func @kernel_matmul(%arg0: i32, %arg1: i32, %arg2: i32, %arg3: memref<1x4x16x16xf32, #tpu.memory_space<vmem>>, %arg4: memref<2x8x16xf32, #tpu.memory_space<vmem>>, %arg5: memref<16x16xf32, #tpu.memory_space<vmem>>, %arg6: memref<1x16x8x8xf32, #tpu.memory_space<vmem>>) attributes {dimension_semantics = [#tpu.dimension_semantics<parallel>, #tpu.dimension_semantics<parallel>, #tpu.dimension_semantics<parallel>], iteration_bounds = array<i64: 2, 1, 1>, scalar_prefetch = 0 : i64, scratch_operands = 0 : i64, tpu.core_type = #tpu.core_type<tc>, window_params = [{transform_indices = @transform_0, window_bounds = array<i64: 1, 4, 16, 16>}, {pipeline_mode = #tpu.pipeline_mode<synchronous>, transform_indices = @transform_1, window_bounds = array<i64: 2, 8, 16>}, {pipeline_mode = #tpu.pipeline_mode<synchronous>, transform_indices = @transform_2, window_bounds = array<i64: 16, 16>}, {transform_indices = @transform_3, window_bounds = array<i64: 1, 16, 8, 8>}]} {
    %c0 = arith.constant 0 : index
    %c0_0 = arith.constant 0 : index
    %c0_1 = arith.constant 0 : index
    %c0_2 = arith.constant 0 : index
    %0 = vector.load %arg3[%c0, %c0_0, %c0_1, %c0_2] : memref<1x4x16x16xf32, #tpu.memory_space<vmem>>, vector<1x1x16x16xf32>
    %1 = vector.shape_cast %0 : vector<1x1x16x16xf32> to vector<16x16xf32>
    %c0_3 = arith.constant 0 : index
    %c0_4 = arith.constant 0 : index
    %c0_5 = arith.constant 0 : index
    %2 = vector.load %arg4[%c0_3, %c0_4, %c0_5] : memref<2x8x16xf32, #tpu.memory_space<vmem>>, vector<1x8x16xf32>
    %3 = vector.shape_cast %2 : vector<1x8x16xf32> to vector<8x16xf32>
    %cst = arith.constant dense<0.000000e+00> : vector<8x16xf32>
    %4 = tpu.matmul %3, %1, %cst {dimension_numbers = #tpu.dot_dimension_numbers<[1], [0], [0], [1], [0, 0, 1, 1], [], []>} : vector<8x16xf32>, vector<16x16xf32>, vector<8x16xf32> -> vector<8x16xf32>
    %c0_6 = arith.constant 0 : index
    %c0_7 = arith.constant 0 : index
    %5 = vector.load %arg5[%c0_6, %c0_7] : memref<16x16xf32, #tpu.memory_space<vmem>>, vector<16x16xf32>
    %cst_8 = arith.constant dense<0.000000e+00> : vector<8x16xf32>
    %6 = tpu.matmul %4, %5, %cst_8 {dimension_numbers = #tpu.dot_dimension_numbers<[1], [0], [0], [1], [0, 0, 1, 1], [], []>} : vector<8x16xf32>, vector<16x16xf32>, vector<8x16xf32> -> vector<8x16xf32>
    %7 = vector.extract_strided_slice %6 {offsets = [0, 0], sizes = [8, 8], strides = [1, 1]} : vector<8x16xf32> to vector<8x8xf32>
    %c0_9 = arith.constant 0 : index
    %c0_10 = arith.constant 0 : index
    %c0_11 = arith.constant 0 : index
    %c0_12 = arith.constant 0 : index
    %8 = vector.load %arg6[%c0_9, %c0_10, %c0_11, %c0_12] : memref<1x16x8x8xf32, #tpu.memory_space<vmem>>, vector<1x1x8x8xf32>
    %9 = vector.shape_cast %8 : vector<1x1x8x8xf32> to vector<8x8xf32>
    %10 = vector.shape_cast %7 : vector<8x8xf32> to vector<1x1x8x8xf32>
    tpu.vector_store %arg6[%c0_9, %c0_10, %c0_11, %c0_12], %10 {strides = array<i32>} : memref<1x16x8x8xf32, #tpu.memory_space<vmem>>, vector<1x1x8x8xf32>,
    %11 = vector.extract_strided_slice %6 {offsets = [0, 8], sizes = [8, 8], strides = [1, 1]} : vector<8x16xf32> to vector<8x8xf32>
    %c0_13 = arith.constant 0 : index
    %c1 = arith.constant 1 : index
    %c0_14 = arith.constant 0 : index
    %c0_15 = arith.constant 0 : index
    %12 = vector.load %arg6[%c0_13, %c1, %c0_14, %c0_15] : memref<1x16x8x8xf32, #tpu.memory_space<vmem>>, vector<1x1x8x8xf32>
    %13 = vector.shape_cast %12 : vector<1x1x8x8xf32> to vector<8x8xf32>
    %14 = vector.shape_cast %11 : vector<8x8xf32> to vector<1x1x8x8xf32>
    tpu.vector_store %arg6[%c0_13, %c1, %c0_14, %c0_15], %14 {strides = array<i32>} : memref<1x16x8x8xf32, #tpu.memory_space<vmem>>, vector<1x1x8x8xf32>,
    %c1_16 = arith.constant 1 : index
    %c0_17 = arith.constant 0 : index
    %c0_18 = arith.constant 0 : index
    %15 = vector.load %arg4[%c1_16, %c0_17, %c0_18] : memref<2x8x16xf32, #tpu.memory_space<vmem>>, vector<1x8x16xf32>
    %16 = vector.shape_cast %15 : vector<1x8x16xf32> to vector<8x16xf32>
    %cst_19 = arith.constant dense<0.000000e+00> : vector<8x16xf32>
    %17 = tpu.matmul %16, %1, %cst_19 {dimension_numbers = #tpu.dot_dimension_numbers<[1], [0], [0], [1], [0, 0, 1, 1], [], []>} : vector<8x16xf32>, vector<16x16xf32>, vector<8x16xf32> -> vector<8x16xf32>
    %c0_20 = arith.constant 0 : index
    %c0_21 = arith.constant 0 : index
    %18 = vector.load %arg5[%c0_20, %c0_21] : memref<16x16xf32, #tpu.memory_space<vmem>>, vector<16x16xf32>
    %cst_22 = arith.constant dense<0.000000e+00> : vector<8x16xf32>
    %19 = tpu.matmul %17, %18, %cst_22 {dimension_numbers = #tpu.dot_dimension_numbers<[1], [0], [0], [1], [0, 0, 1, 1], [], []>} : vector<8x16xf32>, vector<16x16xf32>, vector<8x16xf32> -> vector<8x16xf32>
    %20 = vector.extract_strided_slice %19 {offsets = [0, 0], sizes = [8, 8], strides = [1, 1]} : vector<8x16xf32> to vector<8x8xf32>
    %c0_23 = arith.constant 0 : index
    %c2 = arith.constant 2 : index
    %c0_24 = arith.constant 0 : index
    %c0_25 = arith.constant 0 : index
    %21 = vector.load %arg6[%c0_23, %c2, %c0_24, %c0_25] : memref<1x16x8x8xf32, #tpu.memory_space<vmem>>, vector<1x1x8x8xf32>
    %22 = vector.shape_cast %21 : vector<1x1x8x8xf32> to vector<8x8xf32>
    %23 = vector.shape_cast %20 : vector<8x8xf32> to vector<1x1x8x8xf32>
    tpu.vector_store %arg6[%c0_23, %c2, %c0_24, %c0_25], %23 {strides = array<i32>} : memref<1x16x8x8xf32, #tpu.memory_space<vmem>>, vector<1x1x8x8xf32>,
    %24 = vector.extract_strided_slice %19 {offsets = [0, 8], sizes = [8, 8], strides = [1, 1]} : vector<8x16xf32> to vector<8x8xf32>
    %c0_26 = arith.constant 0 : index
    %c3 = arith.constant 3 : index
    %c0_27 = arith.constant 0 : index
    %c0_28 = arith.constant 0 : index
    %25 = vector.load %arg6[%c0_26, %c3, %c0_27, %c0_28] : memref<1x16x8x8xf32, #tpu.memory_space<vmem>>, vector<1x1x8x8xf32>
    %26 = vector.shape_cast %25 : vector<1x1x8x8xf32> to vector<8x8xf32>
    %27 = vector.shape_cast %24 : vector<8x8xf32> to vector<1x1x8x8xf32>
    tpu.vector_store %arg6[%c0_26, %c3, %c0_27, %c0_28], %27 {strides = array<i32>} : memref<1x16x8x8xf32, #tpu.memory_space<vmem>>, vector<1x1x8x8xf32>,
    %c0_29 = arith.constant 0 : index
    %c1_30 = arith.constant 1 : index
    %c0_31 = arith.constant 0 : index
    %c0_32 = arith.constant 0 : index
    %28 = vector.load %arg3[%c0_29, %c1_30, %c0_31, %c0_32] : memref<1x4x16x16xf32, #tpu.memory_space<vmem>>, vector<1x1x16x16xf32>
    %29 = vector.shape_cast %28 : vector<1x1x16x16xf32> to vector<16x16xf32>
    %c0_33 = arith.constant 0 : index
    %c0_34 = arith.constant 0 : index
    %c0_35 = arith.constant 0 : index
    %30 = vector.load %arg4[%c0_33, %c0_34, %c0_35] : memref<2x8x16xf32, #tpu.memory_space<vmem>>, vector<1x8x16xf32>
    %31 = vector.shape_cast %30 : vector<1x8x16xf32> to vector<8x16xf32>
    %cst_36 = arith.constant dense<0.000000e+00> : vector<8x16xf32>
    %32 = tpu.matmul %31, %29, %cst_36 {dimension_numbers = #tpu.dot_dimension_numbers<[1], [0], [0], [1], [0, 0, 1, 1], [], []>} : vector<8x16xf32>, vector<16x16xf32>, vector<8x16xf32> -> vector<8x16xf32>
    %c0_37 = arith.constant 0 : index
    %c0_38 = arith.constant 0 : index
    %33 = vector.load %arg5[%c0_37, %c0_38] : memref<16x16xf32, #tpu.memory_space<vmem>>, vector<16x16xf32>
    %cst_39 = arith.constant dense<0.000000e+00> : vector<8x16xf32>
    %34 = tpu.matmul %32, %33, %cst_39 {dimension_numbers = #tpu.dot_dimension_numbers<[1], [0], [0], [1], [0, 0, 1, 1], [], []>} : vector<8x16xf32>, vector<16x16xf32>, vector<8x16xf32> -> vector<8x16xf32>
    %35 = vector.extract_strided_slice %34 {offsets = [0, 0], sizes = [8, 8], strides = [1, 1]} : vector<8x16xf32> to vector<8x8xf32>
    %c0_40 = arith.constant 0 : index
    %c4 = arith.constant 4 : index
    %c0_41 = arith.constant 0 : index
    %c0_42 = arith.constant 0 : index
    %36 = vector.load %arg6[%c0_40, %c4, %c0_41, %c0_42] : memref<1x16x8x8xf32, #tpu.memory_space<vmem>>, vector<1x1x8x8xf32>
    %37 = vector.shape_cast %36 : vector<1x1x8x8xf32> to vector<8x8xf32>
    %38 = vector.shape_cast %35 : vector<8x8xf32> to vector<1x1x8x8xf32>
    tpu.vector_store %arg6[%c0_40, %c4, %c0_41, %c0_42], %38 {strides = array<i32>} : memref<1x16x8x8xf32, #tpu.memory_space<vmem>>, vector<1x1x8x8xf32>,
    %39 = vector.extract_strided_slice %34 {offsets = [0, 8], sizes = [8, 8], strides = [1, 1]} : vector<8x16xf32> to vector<8x8xf32>
    %c0_43 = arith.constant 0 : index
    %c5 = arith.constant 5 : index
    %c0_44 = arith.constant 0 : index
    %c0_45 = arith.constant 0 : index
    %40 = vector.load %arg6[%c0_43, %c5, %c0_44, %c0_45] : memref<1x16x8x8xf32, #tpu.memory_space<vmem>>, vector<1x1x8x8xf32>
    %41 = vector.shape_cast %40 : vector<1x1x8x8xf32> to vector<8x8xf32>
    %42 = vector.shape_cast %39 : vector<8x8xf32> to vector<1x1x8x8xf32>
    tpu.vector_store %arg6[%c0_43, %c5, %c0_44, %c0_45], %42 {strides = array<i32>} : memref<1x16x8x8xf32, #tpu.memory_space<vmem>>, vector<1x1x8x8xf32>,
    %c1_46 = arith.constant 1 : index
    %c0_47 = arith.constant 0 : index
    %c0_48 = arith.constant 0 : index
    %43 = vector.load %arg4[%c1_46, %c0_47, %c0_48] : memref<2x8x16xf32, #tpu.memory_space<vmem>>, vector<1x8x16xf32>
    %44 = vector.shape_cast %43 : vector<1x8x16xf32> to vector<8x16xf32>
    %cst_49 = arith.constant dense<0.000000e+00> : vector<8x16xf32>
    %45 = tpu.matmul %44, %29, %cst_49 {dimension_numbers = #tpu.dot_dimension_numbers<[1], [0], [0], [1], [0, 0, 1, 1], [], []>} : vector<8x16xf32>, vector<16x16xf32>, vector<8x16xf32> -> vector<8x16xf32>
    %c0_50 = arith.constant 0 : index
    %c0_51 = arith.constant 0 : index
    %46 = vector.load %arg5[%c0_50, %c0_51] : memref<16x16xf32, #tpu.memory_space<vmem>>, vector<16x16xf32>
    %cst_52 = arith.constant dense<0.000000e+00> : vector<8x16xf32>
    %47 = tpu.matmul %45, %46, %cst_52 {dimension_numbers = #tpu.dot_dimension_numbers<[1], [0], [0], [1], [0, 0, 1, 1], [], []>} : vector<8x16xf32>, vector<16x16xf32>, vector<8x16xf32> -> vector<8x16xf32>
    %48 = vector.extract_strided_slice %47 {offsets = [0, 0], sizes = [8, 8], strides = [1, 1]} : vector<8x16xf32> to vector<8x8xf32>
    %c0_53 = arith.constant 0 : index
    %c6 = arith.constant 6 : index
    %c0_54 = arith.constant 0 : index
    %c0_55 = arith.constant 0 : index
    %49 = vector.load %arg6[%c0_53, %c6, %c0_54, %c0_55] : memref<1x16x8x8xf32, #tpu.memory_space<vmem>>, vector<1x1x8x8xf32>
    %50 = vector.shape_cast %49 : vector<1x1x8x8xf32> to vector<8x8xf32>
    %51 = vector.shape_cast %48 : vector<8x8xf32> to vector<1x1x8x8xf32>
    tpu.vector_store %arg6[%c0_53, %c6, %c0_54, %c0_55], %51 {strides = array<i32>} : memref<1x16x8x8xf32, #tpu.memory_space<vmem>>, vector<1x1x8x8xf32>,
    %52 = vector.extract_strided_slice %47 {offsets = [0, 8], sizes = [8, 8], strides = [1, 1]} : vector<8x16xf32> to vector<8x8xf32>
    %c0_56 = arith.constant 0 : index
    %c7 = arith.constant 7 : index
    %c0_57 = arith.constant 0 : index
    %c0_58 = arith.constant 0 : index
    %53 = vector.load %arg6[%c0_56, %c7, %c0_57, %c0_58] : memref<1x16x8x8xf32, #tpu.memory_space<vmem>>, vector<1x1x8x8xf32>
    %54 = vector.shape_cast %53 : vector<1x1x8x8xf32> to vector<8x8xf32>
    %55 = vector.shape_cast %52 : vector<8x8xf32> to vector<1x1x8x8xf32>
    tpu.vector_store %arg6[%c0_56, %c7, %c0_57, %c0_58], %55 {strides = array<i32>} : memref<1x16x8x8xf32, #tpu.memory_space<vmem>>, vector<1x1x8x8xf32>,
    %c0_59 = arith.constant 0 : index
    %c2_60 = arith.constant 2 : index
    %c0_61 = arith.constant 0 : index
    %c0_62 = arith.constant 0 : index
    %56 = vector.load %arg3[%c0_59, %c2_60, %c0_61, %c0_62] : memref<1x4x16x16xf32, #tpu.memory_space<vmem>>, vector<1x1x16x16xf32>
    %57 = vector.shape_cast %56 : vector<1x1x16x16xf32> to vector<16x16xf32>
    %c0_63 = arith.constant 0 : index
    %c0_64 = arith.constant 0 : index
    %c0_65 = arith.constant 0 : index
    %58 = vector.load %arg4[%c0_63, %c0_64, %c0_65] : memref<2x8x16xf32, #tpu.memory_space<vmem>>, vector<1x8x16xf32>
    %59 = vector.shape_cast %58 : vector<1x8x16xf32> to vector<8x16xf32>
    %cst_66 = arith.constant dense<0.000000e+00> : vector<8x16xf32>
    %60 = tpu.matmul %59, %57, %cst_66 {dimension_numbers = #tpu.dot_dimension_numbers<[1], [0], [0], [1], [0, 0, 1, 1], [], []>} : vector<8x16xf32>, vector<16x16xf32>, vector<8x16xf32> -> vector<8x16xf32>
    %c0_67 = arith.constant 0 : index
    %c0_68 = arith.constant 0 : index
    %61 = vector.load %arg5[%c0_67, %c0_68] : memref<16x16xf32, #tpu.memory_space<vmem>>, vector<16x16xf32>
    %cst_69 = arith.constant dense<0.000000e+00> : vector<8x16xf32>
    %62 = tpu.matmul %60, %61, %cst_69 {dimension_numbers = #tpu.dot_dimension_numbers<[1], [0], [0], [1], [0, 0, 1, 1], [], []>} : vector<8x16xf32>, vector<16x16xf32>, vector<8x16xf32> -> vector<8x16xf32>
    %63 = vector.extract_strided_slice %62 {offsets = [0, 0], sizes = [8, 8], strides = [1, 1]} : vector<8x16xf32> to vector<8x8xf32>
    %c0_70 = arith.constant 0 : index
    %c8 = arith.constant 8 : index
    %c0_71 = arith.constant 0 : index
    %c0_72 = arith.constant 0 : index
    %64 = vector.load %arg6[%c0_70, %c8, %c0_71, %c0_72] : memref<1x16x8x8xf32, #tpu.memory_space<vmem>>, vector<1x1x8x8xf32>
    %65 = vector.shape_cast %64 : vector<1x1x8x8xf32> to vector<8x8xf32>
    %66 = vector.shape_cast %63 : vector<8x8xf32> to vector<1x1x8x8xf32>
    tpu.vector_store %arg6[%c0_70, %c8, %c0_71, %c0_72], %66 {strides = array<i32>} : memref<1x16x8x8xf32, #tpu.memory_space<vmem>>, vector<1x1x8x8xf32>,
    %67 = vector.extract_strided_slice %62 {offsets = [0, 8], sizes = [8, 8], strides = [1, 1]} : vector<8x16xf32> to vector<8x8xf32>
    %c0_73 = arith.constant 0 : index
    %c9 = arith.constant 9 : index
    %c0_74 = arith.constant 0 : index
    %c0_75 = arith.constant 0 : index
    %68 = vector.load %arg6[%c0_73, %c9, %c0_74, %c0_75] : memref<1x16x8x8xf32, #tpu.memory_space<vmem>>, vector<1x1x8x8xf32>
    %69 = vector.shape_cast %68 : vector<1x1x8x8xf32> to vector<8x8xf32>
    %70 = vector.shape_cast %67 : vector<8x8xf32> to vector<1x1x8x8xf32>
    tpu.vector_store %arg6[%c0_73, %c9, %c0_74, %c0_75], %70 {strides = array<i32>} : memref<1x16x8x8xf32, #tpu.memory_space<vmem>>, vector<1x1x8x8xf32>,
    %c1_76 = arith.constant 1 : index
    %c0_77 = arith.constant 0 : index
    %c0_78 = arith.constant 0 : index
    %71 = vector.load %arg4[%c1_76, %c0_77, %c0_78] : memref<2x8x16xf32, #tpu.memory_space<vmem>>, vector<1x8x16xf32>
    %72 = vector.shape_cast %71 : vector<1x8x16xf32> to vector<8x16xf32>
    %cst_79 = arith.constant dense<0.000000e+00> : vector<8x16xf32>
    %73 = tpu.matmul %72, %57, %cst_79 {dimension_numbers = #tpu.dot_dimension_numbers<[1], [0], [0], [1], [0, 0, 1, 1], [], []>} : vector<8x16xf32>, vector<16x16xf32>, vector<8x16xf32> -> vector<8x16xf32>
    %c0_80 = arith.constant 0 : index
    %c0_81 = arith.constant 0 : index
    %74 = vector.load %arg5[%c0_80, %c0_81] : memref<16x16xf32, #tpu.memory_space<vmem>>, vector<16x16xf32>
    %cst_82 = arith.constant dense<0.000000e+00> : vector<8x16xf32>
    %75 = tpu.matmul %73, %74, %cst_82 {dimension_numbers = #tpu.dot_dimension_numbers<[1], [0], [0], [1], [0, 0, 1, 1], [], []>} : vector<8x16xf32>, vector<16x16xf32>, vector<8x16xf32> -> vector<8x16xf32>
    %76 = vector.extract_strided_slice %75 {offsets = [0, 0], sizes = [8, 8], strides = [1, 1]} : vector<8x16xf32> to vector<8x8xf32>
    %c0_83 = arith.constant 0 : index
    %c10 = arith.constant 10 : index
    %c0_84 = arith.constant 0 : index
    %c0_85 = arith.constant 0 : index
    %77 = vector.load %arg6[%c0_83, %c10, %c0_84, %c0_85] : memref<1x16x8x8xf32, #tpu.memory_space<vmem>>, vector<1x1x8x8xf32>
    %78 = vector.shape_cast %77 : vector<1x1x8x8xf32> to vector<8x8xf32>
    %79 = vector.shape_cast %76 : vector<8x8xf32> to vector<1x1x8x8xf32>
    tpu.vector_store %arg6[%c0_83, %c10, %c0_84, %c0_85], %79 {strides = array<i32>} : memref<1x16x8x8xf32, #tpu.memory_space<vmem>>, vector<1x1x8x8xf32>,
    %80 = vector.extract_strided_slice %75 {offsets = [0, 8], sizes = [8, 8], strides = [1, 1]} : vector<8x16xf32> to vector<8x8xf32>
    %c0_86 = arith.constant 0 : index
    %c11 = arith.constant 11 : index
    %c0_87 = arith.constant 0 : index
    %c0_88 = arith.constant 0 : index
    %81 = vector.load %arg6[%c0_86, %c11, %c0_87, %c0_88] : memref<1x16x8x8xf32, #tpu.memory_space<vmem>>, vector<1x1x8x8xf32>
    %82 = vector.shape_cast %81 : vector<1x1x8x8xf32> to vector<8x8xf32>
    %83 = vector.shape_cast %80 : vector<8x8xf32> to vector<1x1x8x8xf32>
    tpu.vector_store %arg6[%c0_86, %c11, %c0_87, %c0_88], %83 {strides = array<i32>} : memref<1x16x8x8xf32, #tpu.memory_space<vmem>>, vector<1x1x8x8xf32>,
    %c0_89 = arith.constant 0 : index
    %c3_90 = arith.constant 3 : index
    %c0_91 = arith.constant 0 : index
    %c0_92 = arith.constant 0 : index
    %84 = vector.load %arg3[%c0_89, %c3_90, %c0_91, %c0_92] : memref<1x4x16x16xf32, #tpu.memory_space<vmem>>, vector<1x1x16x16xf32>
    %85 = vector.shape_cast %84 : vector<1x1x16x16xf32> to vector<16x16xf32>
    %c0_93 = arith.constant 0 : index
    %c0_94 = arith.constant 0 : index
    %c0_95 = arith.constant 0 : index
    %86 = vector.load %arg4[%c0_93, %c0_94, %c0_95] : memref<2x8x16xf32, #tpu.memory_space<vmem>>, vector<1x8x16xf32>
    %87 = vector.shape_cast %86 : vector<1x8x16xf32> to vector<8x16xf32>
    %cst_96 = arith.constant dense<0.000000e+00> : vector<8x16xf32>
    %88 = tpu.matmul %87, %85, %cst_96 {dimension_numbers = #tpu.dot_dimension_numbers<[1], [0], [0], [1], [0, 0, 1, 1], [], []>} : vector<8x16xf32>, vector<16x16xf32>, vector<8x16xf32> -> vector<8x16xf32>
    %c0_97 = arith.constant 0 : index
    %c0_98 = arith.constant 0 : index
    %89 = vector.load %arg5[%c0_97, %c0_98] : memref<16x16xf32, #tpu.memory_space<vmem>>, vector<16x16xf32>
    %cst_99 = arith.constant dense<0.000000e+00> : vector<8x16xf32>
    %90 = tpu.matmul %88, %89, %cst_99 {dimension_numbers = #tpu.dot_dimension_numbers<[1], [0], [0], [1], [0, 0, 1, 1], [], []>} : vector<8x16xf32>, vector<16x16xf32>, vector<8x16xf32> -> vector<8x16xf32>
    %91 = vector.extract_strided_slice %90 {offsets = [0, 0], sizes = [8, 8], strides = [1, 1]} : vector<8x16xf32> to vector<8x8xf32>
    %c0_100 = arith.constant 0 : index
    %c12 = arith.constant 12 : index
    %c0_101 = arith.constant 0 : index
    %c0_102 = arith.constant 0 : index
    %92 = vector.load %arg6[%c0_100, %c12, %c0_101, %c0_102] : memref<1x16x8x8xf32, #tpu.memory_space<vmem>>, vector<1x1x8x8xf32>
    %93 = vector.shape_cast %92 : vector<1x1x8x8xf32> to vector<8x8xf32>
    %94 = vector.shape_cast %91 : vector<8x8xf32> to vector<1x1x8x8xf32>
    tpu.vector_store %arg6[%c0_100, %c12, %c0_101, %c0_102], %94 {strides = array<i32>} : memref<1x16x8x8xf32, #tpu.memory_space<vmem>>, vector<1x1x8x8xf32>,
    %95 = vector.extract_strided_slice %90 {offsets = [0, 8], sizes = [8, 8], strides = [1, 1]} : vector<8x16xf32> to vector<8x8xf32>
    %c0_103 = arith.constant 0 : index
    %c13 = arith.constant 13 : index
    %c0_104 = arith.constant 0 : index
    %c0_105 = arith.constant 0 : index
    %96 = vector.load %arg6[%c0_103, %c13, %c0_104, %c0_105] : memref<1x16x8x8xf32, #tpu.memory_space<vmem>>, vector<1x1x8x8xf32>
    %97 = vector.shape_cast %96 : vector<1x1x8x8xf32> to vector<8x8xf32>
    %98 = vector.shape_cast %95 : vector<8x8xf32> to vector<1x1x8x8xf32>
    tpu.vector_store %arg6[%c0_103, %c13, %c0_104, %c0_105], %98 {strides = array<i32>} : memref<1x16x8x8xf32, #tpu.memory_space<vmem>>, vector<1x1x8x8xf32>,
    %c1_106 = arith.constant 1 : index
    %c0_107 = arith.constant 0 : index
    %c0_108 = arith.constant 0 : index
    %99 = vector.load %arg4[%c1_106, %c0_107, %c0_108] : memref<2x8x16xf32, #tpu.memory_space<vmem>>, vector<1x8x16xf32>
    %100 = vector.shape_cast %99 : vector<1x8x16xf32> to vector<8x16xf32>
    %cst_109 = arith.constant dense<0.000000e+00> : vector<8x16xf32>
    %101 = tpu.matmul %100, %85, %cst_109 {dimension_numbers = #tpu.dot_dimension_numbers<[1], [0], [0], [1], [0, 0, 1, 1], [], []>} : vector<8x16xf32>, vector<16x16xf32>, vector<8x16xf32> -> vector<8x16xf32>
    %c0_110 = arith.constant 0 : index
    %c0_111 = arith.constant 0 : index
    %102 = vector.load %arg5[%c0_110, %c0_111] : memref<16x16xf32, #tpu.memory_space<vmem>>, vector<16x16xf32>
    %cst_112 = arith.constant dense<0.000000e+00> : vector<8x16xf32>
    %103 = tpu.matmul %101, %102, %cst_112 {dimension_numbers = #tpu.dot_dimension_numbers<[1], [0], [0], [1], [0, 0, 1, 1], [], []>} : vector<8x16xf32>, vector<16x16xf32>, vector<8x16xf32> -> vector<8x16xf32>
    %104 = vector.extract_strided_slice %103 {offsets = [0, 0], sizes = [8, 8], strides = [1, 1]} : vector<8x16xf32> to vector<8x8xf32>
    %c0_113 = arith.constant 0 : index
    %c14 = arith.constant 14 : index
    %c0_114 = arith.constant 0 : index
    %c0_115 = arith.constant 0 : index
    %105 = vector.load %arg6[%c0_113, %c14, %c0_114, %c0_115] : memref<1x16x8x8xf32, #tpu.memory_space<vmem>>, vector<1x1x8x8xf32>
    %106 = vector.shape_cast %105 : vector<1x1x8x8xf32> to vector<8x8xf32>
    %107 = vector.shape_cast %104 : vector<8x8xf32> to vector<1x1x8x8xf32>
    tpu.vector_store %arg6[%c0_113, %c14, %c0_114, %c0_115], %107 {strides = array<i32>} : memref<1x16x8x8xf32, #tpu.memory_space<vmem>>, vector<1x1x8x8xf32>,
    %108 = vector.extract_strided_slice %103 {offsets = [0, 8], sizes = [8, 8], strides = [1, 1]} : vector<8x16xf32> to vector<8x8xf32>
    %c0_116 = arith.constant 0 : index
    %c15 = arith.constant 15 : index
    %c0_117 = arith.constant 0 : index
    %c0_118 = arith.constant 0 : index
    %109 = vector.load %arg6[%c0_116, %c15, %c0_117, %c0_118] : memref<1x16x8x8xf32, #tpu.memory_space<vmem>>, vector<1x1x8x8xf32>
    %110 = vector.shape_cast %109 : vector<1x1x8x8xf32> to vector<8x8xf32>
    %111 = vector.shape_cast %108 : vector<8x8xf32> to vector<1x1x8x8xf32>
    tpu.vector_store %arg6[%c0_116, %c15, %c0_117, %c0_118], %111 {strides = array<i32>} : memref<1x16x8x8xf32, #tpu.memory_space<vmem>>, vector<1x1x8x8xf32>,
    return
  }
  func.func @transform_0(%arg0: i32, %arg1: i32, %arg2: i32) -> (i32, i32, i32, i32) {
    %c0_i32 = arith.constant 0 : i32
    %c0_i32_0 = arith.constant 0 : i32
    return %arg0, %arg1, %arg2, %c0_i32 : i32, i32, i32, i32
  }
  func.func @transform_1(%arg0: i32, %arg1: i32, %arg2: i32) -> (i32, i32, i32) {
    %c0_i32 = arith.constant 0 : i32
    %c0_i32_0 = arith.constant 0 : i32
    %c0_i32_1 = arith.constant 0 : i32
    %c0_i32_2 = arith.constant 0 : i32
    return %c0_i32, %c0_i32_0, %c0_i32_1 : i32, i32, i32
  }
  func.func @transform_2(%arg0: i32, %arg1: i32, %arg2: i32) -> (i32, i32) {
    %c0_i32 = arith.constant 0 : i32
    %c0_i32_0 = arith.constant 0 : i32
    %c0_i32_1 = arith.constant 0 : i32
    return %c0_i32, %c0_i32_0 : i32, i32
  }
  func.func @transform_3(%arg0: i32, %arg1: i32, %arg2: i32) -> (i32, i32, i32, i32) {
    %c0_i32 = arith.constant 0 : i32
    %c0_i32_0 = arith.constant 0 : i32
    return %arg0, %arg1, %arg2, %c0_i32 : i32, i32, i32, i32
  }
}

</mosaic_0001>

<llo_original>
// kernel: run.1
$region0: #{run.1}
  #allocation0 [shape = 'u32[]', space=smem, size = 0x4, offset = 0x4, fixed_abs, tag = 'smem constant byte address 0x4 - core index']
  #allocation1 [shape = 'u32[72,128]{1,0:T(1,128)}', space=vmem, size = 0x9000, scoped, tag = 'internal scratch']
  %s0 = inlined_call_operand.hbm [shape: f32[2,4,16,16], index: 0, kind: input, shape index: {}]
  %s1 = inlined_call_operand.hbm [shape: f32[16,16], index: 1, kind: input, shape index: {}]
  %s2 = inlined_call_operand.vmem [shape: f32[2,16,8,8], index: 2, kind: output, shape index: {}]
  %s3 = sld [smem:[#allocation0]]
  $region49: #{run.1} parent=0
    _
  %s5 = ssub.s32 1, %s3
  %s6 = scalar_select 0, %s5, %s3
  $region1: #{run.1} parent=0
    #allocation2 [shape = 'u8[65536]{0}', space=vmem, size = 0x10000, scoped, tag = 'input window, operand 0']
    #allocation3 [shape = 's32[2]{0}', space=sflag, size = 0x8, scoped, tag = 'scoped memory for run.1']
    #allocation4 [shape = 'u8[8192]{0}', space=vmem, size = 0x2000, scoped, tag = 'input window, operand 1, single buffered']
    #allocation5 [shape = 's32[1]{0}', space=sflag, size = 0x4, scoped, tag = 'scoped memory for run.1']
    %7 = vsyncpa [#allocation3], 0
    %s8 = scalar_lea.sflag [#allocation3], 1
    %9 = vsyncpa %s8, 0
    %10 = vsyncpa [#allocation5], 0
    loop: start=0, step=1, limit=4
    $region2: #{run.1} parent=1 // loop_pre_header
      _
    $region3: #{run.1} parent=1 // loop_header
      %s12 = sphi 0, %s16
      %p13 = scmp.ge.s32.totalorder %s12, 4
      %s19 = sphi 0, %s38
      %s20 = sphi 0, %s34
      %s21 = sphi 0, %s30
      %s22 = sphi 0, %s19
      %s23 = sphi 0, %s20
      %s24 = sphi 0, %s21
      %s25 = sphi 0, %s22
      %s26 = sphi 0, %s23
      %s27 = sphi 0, %s24
      %s45 = sphi 0, %s47
      %s48 = sphi 0, %s45
      %s49 = sphi 0, %s48
      %s65 = sphi 0, %s49
      %s69 = sphi 0, %s69
      %s71 = sphi 0, %s69
      %s72 = sphi 0, %s71
      %s86 = sphi 0, %s72
      %s96 = sphi 0, %s98
      %s99 = sphi 0, %s96
      %s100 = sphi 0, %s99
      %s116 = sphi 0, %s100
    $region4: #{run.1} parent=1 // loop_header_branch
      %15 = sbr.rel (%p13) target = $region8
    $region5: #{run.1} parent=1 // loop_body
      %s17 = ssub.s32 %s12, 1
      %s18 = ssub.s32 %s12, 2
      %s28 = sadd.s32 1, %s21
      %p29 = scmp.ge.s32.totalorder %s28, 1
      %s30 = scalar_select %p29, 0, %s28
      %s31 = sadd.s32 1, %s20
      %s32 = scalar_select %p29, %s31, %s20
      %p33 = scmp.ge.s32.totalorder %s32, 1
      %s34 = scalar_select %p33, 0, %s32
      %s35 = sadd.s32 1, %s19
      %s36 = scalar_select %p33, %s35, %s19
      %p37 = scmp.ge.s32.totalorder %s36, 2
      %s38 = scalar_select %p37, 0, %s36
      %s39 = ssub.s32 %s19, %s38
      %s40 = ssub.s32 %s20, %s34
      %s41 = sor.u32 %s39, %s40
      %s42 = ssub.s32 %s21, %s30
      %s43 = sor.u32 %s41, %s42
      %p44 = scmp.eq.s32.totalorder %s43, 0
      %s46 = sadd.s32 %s45, 1
      %s47 = scalar_select %p44, %s45, %s46
      %p50 = pneg %p44
      %p51 = scmp.eq.s32.totalorder %s12, 1
      %p52 = por %p50, %p51
      %p53 = scmp.ne.s32.totalorder %s45, %s48
      %p54 = scmp.eq.s32.totalorder %s12, 0
      %p55 = por %p53, %p54
      %p56 = scmp.ne.s32.totalorder %s45, %s48
      %p57 = scmp.eq.s32.totalorder %s17, 1
      %p58 = por %p56, %p57
      %p59 = scmp.ne.s32.totalorder %s48, %s49
      %p60 = scmp.eq.s32.totalorder %s17, 0
      %p61 = por %p59, %p60
      %p62 = scmp.ne.s32.totalorder %s48, %s49
      %p63 = scmp.eq.s32.totalorder %s18, 1
      %p64 = por %p62, %p63
      %p66 = scmp.ne.s32.totalorder %s49, %s65
      %p67 = scmp.eq.s32.totalorder %s18, 0
      %p68 = por %p66, %p67
      %s70 = sadd.s32 %s69, 1
      %p73 = scmp.eq.s32.totalorder %s12, 1
      %p74 = scmp.ne.s32.totalorder %s69, %s71
      %p75 = scmp.eq.s32.totalorder %s12, 0
      %p76 = por %p74, %p75
      %p77 = scmp.ne.s32.totalorder %s69, %s71
      %p78 = scmp.eq.s32.totalorder %s17, 1
      %p79 = por %p77, %p78
      %p80 = scmp.ne.s32.totalorder %s71, %s72
      %p81 = scmp.eq.s32.totalorder %s17, 0
      %p82 = por %p80, %p81
      %p83 = scmp.ne.s32.totalorder %s71, %s72
      %p84 = scmp.eq.s32.totalorder %s18, 1
      %p85 = por %p83, %p84
      %p87 = scmp.ne.s32.totalorder %s72, %s86
      %p88 = scmp.eq.s32.totalorder %s18, 0
      %p89 = por %p87, %p88
      %s90 = ssub.s32 %s19, %s38
      %s91 = ssub.s32 %s20, %s34
      %s92 = sor.u32 %s90, %s91
      %s93 = ssub.s32 %s21, %s30
      %s94 = sor.u32 %s92, %s93
      %p95 = scmp.eq.s32.totalorder %s94, 0
      %s97 = sadd.s32 %s96, 1
      %s98 = scalar_select %p95, %s96, %s97
      %p101 = pneg %p95
      %p102 = scmp.eq.s32.totalorder %s12, 1
      %p103 = por %p101, %p102
      %p104 = scmp.ne.s32.totalorder %s96, %s99
      %p105 = scmp.eq.s32.totalorder %s12, 0
      %p106 = por %p104, %p105
      %p107 = scmp.ne.s32.totalorder %s96, %s99
      %p108 = scmp.eq.s32.totalorder %s17, 1
      %p109 = por %p107, %p108
      %p110 = scmp.ne.s32.totalorder %s99, %s100
      %p111 = scmp.eq.s32.totalorder %s17, 0
      %p112 = por %p110, %p111
      %p113 = scmp.ne.s32.totalorder %s99, %s100
      %p114 = scmp.eq.s32.totalorder %s18, 1
      %p115 = por %p113, %p114
      %p117 = scmp.ne.s32.totalorder %s100, %s116
      %p118 = scmp.eq.s32.totalorder %s18, 0
      %p119 = por %p117, %p118
      %p120 = scmp.le.s32.totalorder 1, %s12
      %p121 = scmp.lt.s32.totalorder %s12, 3
      %p122 = pnand %p120, %p121
      %p123 = pneg %p122
      // Predicated region
      $region9: #{run.1} parent=5 // pred_check
        _
      $region10: #{run.1} parent=5 // pred_check_branch
        %125 = sbr.rel (%p122) target = $region12
      $region11: #{run.1} parent=5 // pred_region
        %s126 = ssub.s32 %s12, 1
        // Predicated region
        $region13: #{run.1} parent=11 // pred_check
          %p127 = pneg %p82
        $region14: #{run.1} parent=11 // pred_check_branch
          %129 = sbr.rel (%p127) target = $region16
        $region15: #{run.1} parent=11 // pred_region
          %131 = vsyncadd [#allocation5], 0
          %s132 = sshll.u32 %s1, 4
          %s133 = int_to_ptr.hbm [resolvable:$true] %s132
          %s134 = sshll.u32 [#allocation4], 4
          %s135 = int_to_ptr.vmem [resolvable:$true] %s134
          %140 = dma.hbm_to_vmem [thread:$0]  %s133, 256, %s135, [#allocation5], 128, 128, 8
        $region16: #{run.1} parent=11 // pred_fallthru
          _
      $region12: #{run.1} parent=5 // pred_fallthru
        _
      %p141 = scmp.lt.s32.totalorder %s12, 2
      // Predicated region
      $region17: #{run.1} parent=5 // pred_check
        %p142 = pneg %p141
      $region18: #{run.1} parent=5 // pred_check_branch
        %144 = sbr.rel (%p142) target = $region20
      $region19: #{run.1} parent=5 // pred_region
        // Predicated region
        $region21: #{run.1} parent=19 // pred_check
          %p145 = pneg %p55
        $region22: #{run.1} parent=19 // pred_check_branch
          %147 = sbr.rel (%p145) target = $region24
        $region23: #{run.1} parent=19 // pred_region
          %s148 = sand.u32 %s45, 1
          %s149 = scalar_lea.sflag [#allocation3], %s148
          %s150 = sand.u32 %s45, 1
          %s151 = smul.addr %s150, 64
          %s152 = scalar_lea.vmem [#allocation2], %s151
          %s153 = smul.u32 4, %s20
          %s154 = smul.u32 2, %s21
          %156 = vsyncadd %s149, 0
          %s157 = smul.addr %s153, 2
          %s158 = sadd.s32 %s154, %s157
          %s159 = smul.addr %s19, 8
          %s160 = sadd.s32 %s158, %s159
          %s161 = smul.addr %s160, 8
          %s162 = scalar_lea.hbm %s0, %s161
          %s163 = sshll.u32 %s162, 4
          %s164 = int_to_ptr.hbm [resolvable:$true] %s163
          %s165 = sshll.u32 %s152, 4
          %s166 = int_to_ptr.vmem [resolvable:$true] %s165
          %171 = dma.hbm_to_vmem [thread:$0]  %s164, 1024, %s166, %s149, 128, 128, 8
        $region24: #{run.1} parent=19 // pred_fallthru
          _
      $region20: #{run.1} parent=5 // pred_fallthru
        _
      %p172 = scmp.le.s32.totalorder 1, %s12
      %p173 = scmp.lt.s32.totalorder %s12, 3
      %p174 = pnand %p172, %p173
      %p175 = pneg %p174
      // Predicated region
      $region25: #{run.1} parent=5 // pred_check
        _
      $region26: #{run.1} parent=5 // pred_check_branch
        %177 = sbr.rel (%p174) target = $region28
      $region27: #{run.1} parent=5 // pred_region
        %s178 = ssub.s32 %s12, 1
        %s179 = sand.u32 %s48, 1
        %s180 = scalar_lea.sflag [#allocation3], %s179
        %s181 = sand.u32 %s48, 1
        %s182 = smul.addr %s181, 64
        %s183 = scalar_lea.vmem [#allocation2], %s182
        // Predicated region
        $region29: #{run.1} parent=27 // pred_check
          %p184 = pneg %p61
        $region30: #{run.1} parent=27 // pred_check_branch
          %186 = sbr.rel (%p184) target = $region32
        $region31: #{run.1} parent=27 // pred_region
          %188 = dma.done %s180, 1024
        $region32: #{run.1} parent=27 // pred_fallthru
          _
        // Predicated region
        $region33: #{run.1} parent=27 // pred_check
          %p189 = pneg %p82
        $region34: #{run.1} parent=27 // pred_check_branch
          %191 = sbr.rel (%p189) target = $region36
        $region35: #{run.1} parent=27 // pred_region
          %193 = dma.done [#allocation5], 256
        $region36: #{run.1} parent=27 // pred_fallthru
          _
        %s194 = sand.u32 %s48, 1
        %s195 = scalar_lea.sflag [#allocation3], %s194
        %s196 = sand.u32 %s48, 1
        %s197 = smul.addr %s196, 64
        %s198 = scalar_lea.vmem [#allocation2], %s197
        %p199 = pneg %p61
        %p200 = pneg %p58
        %p201 = pneg %p82
        %p202 = pneg %p79
        %p203 = pneg %p112
        %p204 = pneg %p109
        %s205 = smul.u32 16, %s23
        %p206 = scmp.lt.s32.totalorder %s22, 1
        %s207 = scalar_select %p206, %s22, 1
        %p208 = scmp.lt.s32.totalorder %s205, 15
        %s209 = scalar_select %p208, %s205, 15
        %p210 = scmp.lt.s32.totalorder %s24, 0
        %s211 = scalar_select %p210, %s24, 0
        %s212 = sadd.s32 %s211, %s209
        %s213 = smul.addr %s207, 16
        %s214 = sadd.s32 %s212, %s213
        %s215 = smul.addr %s214, 8
        %s216 = scalar_lea.vmem %s2, %s215
        %s217 = smul.u32 4, %s23
        %s218 = smul.u32 2, %s24
        %s219 = smul.u32 16, %s23
        %p220 = scmp.lt.s32.totalorder %s22, 1
        %s221 = scalar_select %p220, %s22, 1
        %p222 = scmp.lt.s32.totalorder %s219, 15
        %s223 = scalar_select %p222, %s219, 15
        %p224 = scmp.lt.s32.totalorder %s24, 0
        %s225 = scalar_select %p224, %s24, 0
        %s226 = sadd.s32 %s225, %s223
        %s227 = smul.addr %s221, 16
        %s228 = sadd.s32 %s226, %s227
        %s229 = smul.addr %s228, 8
        %s230 = scalar_lea.vmem %s2, %s229
        %s231 = smul.u32 16, %s23
        %v232 = vld [vmem:[%s183] ss:$2 sm:$0xff]
        %s233 = scalar_lea.vmem %s183, 16 [#allocation2]
        %v234 = vld [vmem:[%s233] ss:$2 sm:$0xff]
        %s235 = scalar_lea.vmem %s183, 32 [#allocation2]
        %v236 = vld [vmem:[%s235] ss:$2 sm:$0xff]
        %s237 = scalar_lea.vmem %s183, 48 [#allocation2]
        %v238 = vld [vmem:[%s237] ss:$2 sm:$0xff]
        %v239 = vld [vmem:[#allocation4] sm:$0xff]
        %v240 = vld [vmem:[#allocation4 + $0x8] sm:$0xff]
        %vm241 = vcmask 130048
        %v243 = vsel %vm241, %v232, 0
        %v246 = vsel %vm241, %v234, 0
        %v249 = vsel %vm241, %v236, 0
        %v252 = vsel %vm241, %v238, 0
        %254 = vmatpush.msra.mxu0 0.0
        %255 = vmatpush.msra.mxu0 0.0
        %256 = vmatpush.msra.mxu0 0.0
        %257 = vmatpush.msra.mxu0 0.0
        %258 = vmatpush.msra.mxu0 0.0
        %259 = vmatpush.msra.mxu0 0.0
        %260 = vmatpush.msra.mxu0 0.0
        %261 = vmatpush.msra.mxu0 0.0
        %262 = vmatpush.msra.mxu0 0.0
        %263 = vmatpush.msra.mxu0 0.0
        %264 = vmatpush.msra.mxu0 0.0
        %265 = vmatpush.msra.mxu0 0.0
        %266 = vmatpush.msra.mxu0 0.0
        %267 = vmatpush.msra.mxu0 0.0
        %268 = vmatpush.msra.mxu0 %v240
        %269 = vmatpush.msra.mxu0 %v239
        %270 = vmatmul.f32.gmra.mxu0 %v243
        %v271 = vpop.f32.mrf.mxu0
        %v272 = vadd.f32 0.0, %v271
        %273 = vmatmul.f32.gmra.mxu0 %v246
        %v274 = vpop.f32.mrf.mxu0
        %v275 = vadd.f32 0.0, %v274
        %276 = vmatmul.f32.gmra.mxu0 %v249
        %v277 = vpop.f32.mrf.mxu0
        %v278 = vadd.f32 0.0, %v277
        %279 = vmatmul.f32.gmra.mxu0 %v252
        %v280 = vpop.f32.mrf.mxu0
        %v281 = vadd.f32 0.0, %v280
        %282 = vdwg.mxu0
        %283 = vst [vmem:[%s230] sm:$0xff] %v272
        %284 = vst [vmem:[%s230 + $0x20] sm:$0xff] %v275
        %285 = vst [vmem:[%s230 + $0x40] sm:$0xff] %v278
        %286 = vst [vmem:[%s230 + $0x60] sm:$0xff] %v281
        %291 = vrot.lane.b32.xlu0 %v272, 120
        %v292 = vpop.permute.xlu0 %291
        %293 = vrot.lane.b32.xlu0 %v275, 120
        %v294 = vpop.permute.xlu0 %293
        %295 = vrot.lane.b32.xlu0 %v278, 120
        %v296 = vpop.permute.xlu0 %295
        %297 = vrot.lane.b32.xlu0 %v281, 120
        %v298 = vpop.permute.xlu0 %297
        %s303 = scalar_lea.vmem %s230, 8
        %304 = vst [vmem:[%s303] sm:$0xff] %v292
        %305 = vst [vmem:[%s303 + $0x20] sm:$0xff] %v294
        %306 = vst [vmem:[%s303 + $0x40] sm:$0xff] %v296
        %307 = vst [vmem:[%s303 + $0x60] sm:$0xff] %v298
        %s308 = scalar_lea.vmem %s183, 1 [#allocation2]
        %v309 = vld [vmem:[%s308] ss:$2 sm:$0xff]
        %s310 = scalar_lea.vmem %s183, 17 [#allocation2]
        %v311 = vld [vmem:[%s310] ss:$2 sm:$0xff]
        %s312 = scalar_lea.vmem %s183, 33 [#allocation2]
        %v313 = vld [vmem:[%s312] ss:$2 sm:$0xff]
        %s314 = scalar_lea.vmem %s183, 49 [#allocation2]
        %v315 = vld [vmem:[%s314] ss:$2 sm:$0xff]
        %v316 = vld [vmem:[#allocation4] sm:$0xff]
        %v317 = vld [vmem:[#allocation4 + $0x8] sm:$0xff]
        %v319 = vsel %vm241, %v309, 0
        %v322 = vsel %vm241, %v311, 0
        %v325 = vsel %vm241, %v313, 0
        %v328 = vsel %vm241, %v315, 0
        %330 = vmatpush.msra.mxu0 0.0
        %331 = vmatpush.msra.mxu0 0.0
        %332 = vmatpush.msra.mxu0 0.0
        %333 = vmatpush.msra.mxu0 0.0
        %334 = vmatpush.msra.mxu0 0.0
        %335 = vmatpush.msra.mxu0 0.0
        %336 = vmatpush.msra.mxu0 0.0
        %337 = vmatpush.msra.mxu0 0.0
        %338 = vmatpush.msra.mxu0 0.0
        %339 = vmatpush.msra.mxu0 0.0
        %340 = vmatpush.msra.mxu0 0.0
        %341 = vmatpush.msra.mxu0 0.0
        %342 = vmatpush.msra.mxu0 0.0
        %343 = vmatpush.msra.mxu0 0.0
        %344 = vmatpush.msra.mxu0 %v317
        %345 = vmatpush.msra.mxu0 %v316
        %346 = vmatmul.f32.gmra.mxu0 %v319
        %v347 = vpop.f32.mrf.mxu0
        %v348 = vadd.f32 0.0, %v347
        %349 = vmatmul.f32.gmra.mxu0 %v322
        %v350 = vpop.f32.mrf.mxu0
        %v351 = vadd.f32 0.0, %v350
        %352 = vmatmul.f32.gmra.mxu0 %v325
        %v353 = vpop.f32.mrf.mxu0
        %v354 = vadd.f32 0.0, %v353
        %355 = vmatmul.f32.gmra.mxu0 %v328
        %v356 = vpop.f32.mrf.mxu0
        %v357 = vadd.f32 0.0, %v356
        %358 = vdwg.mxu0
        %s359 = scalar_lea.vmem %s230, 16
        %360 = vst [vmem:[%s359] sm:$0xff] %v348
        %361 = vst [vmem:[%s359 + $0x20] sm:$0xff] %v351
        %362 = vst [vmem:[%s359 + $0x40] sm:$0xff] %v354
        %363 = vst [vmem:[%s359 + $0x60] sm:$0xff] %v357
        %368 = vrot.lane.b32.xlu0 %v348, 120
        %v369 = vpop.permute.xlu0 %368
        %370 = vrot.lane.b32.xlu0 %v351, 120
        %v371 = vpop.permute.xlu0 %370
        %372 = vrot.lane.b32.xlu0 %v354, 120
        %v373 = vpop.permute.xlu0 %372
        %374 = vrot.lane.b32.xlu0 %v357, 120
        %v375 = vpop.permute.xlu0 %374
        %s380 = scalar_lea.vmem %s230, 24
        %381 = vst [vmem:[%s380] sm:$0xff] %v369
        %382 = vst [vmem:[%s380 + $0x20] sm:$0xff] %v371
        %383 = vst [vmem:[%s380 + $0x40] sm:$0xff] %v373
        %384 = vst [vmem:[%s380 + $0x60] sm:$0xff] %v375
        %s385 = smul.u32 16, %s23
        %p386 = scmp.lt.s32.totalorder %s22, 1
        %s387 = scalar_select %p386, %s22, 1
        %p388 = scmp.lt.s32.totalorder %s385, 15
        %s389 = scalar_select %p388, %s385, 15
        %p390 = scmp.lt.s32.totalorder %s24, 0
        %s391 = scalar_select %p390, %s24, 0
        %s392 = sadd.s32 %s391, %s389
        %s393 = smul.addr %s387, 16
        %s394 = sadd.s32 %s392, %s393
        %s395 = smul.addr %s394, 8
        %s396 = scalar_lea.vmem %s2, %s395
        // Predicated region
        $region37: #{run.1} parent=27 // pred_check
          %p397 = pneg %p109
        $region38: #{run.1} parent=27 // pred_check_branch
          %399 = sbr.rel (%p397) target = $region40
        $region39: #{run.1} parent=27 // pred_region
          %s400 = smul.u32 16, %s23
        $region40: #{run.1} parent=27 // pred_fallthru
          _
      $region28: #{run.1} parent=5 // pred_fallthru
        _
      %p401 = scmp.le.s32.totalorder 2, %s12
      // Predicated region
      $region41: #{run.1} parent=5 // pred_check
        %p402 = pneg %p401
      $region42: #{run.1} parent=5 // pred_check_branch
        %404 = sbr.rel (%p402) target = $region44
      $region43: #{run.1} parent=5 // pred_region
        %s405 = ssub.s32 %s12, 2
        // Predicated region
        $region45: #{run.1} parent=43 // pred_check
          %p406 = pneg %p115
        $region46: #{run.1} parent=43 // pred_check_branch
          %408 = sbr.rel (%p406) target = $region48
        $region47: #{run.1} parent=43 // pred_region
          %s409 = smul.u32 16, %s26
          %p410 = scmp.lt.s32.totalorder %s25, 1
          %s411 = scalar_select %p410, %s25, 1
          %p412 = scmp.lt.s32.totalorder %s409, 15
          %s413 = scalar_select %p412, %s409, 15
          %p414 = scmp.lt.s32.totalorder %s27, 0
          %s415 = scalar_select %p414, %s27, 0
          %s416 = sadd.s32 %s415, %s413
          %s417 = smul.addr %s411, 16
          %s418 = sadd.s32 %s416, %s417
          %s419 = smul.addr %s418, 8
          %s420 = scalar_lea.vmem %s2, %s419
        $region48: #{run.1} parent=43 // pred_fallthru
          _
      $region44: #{run.1} parent=5 // pred_fallthru
        _
    $region6: #{run.1} parent=1 // loop_footer
      %s16 = sadd.s32 1, %s12
    $region7: #{run.1} parent=1 // loop_footer_branch
      %11 = sbr.rel target = $region3
    $region8: #{run.1} parent=1 // loop_exit
      _
    %421 = vsyncpa [#allocation3], 1
    %s422 = scalar_lea.sflag [#allocation3], 1
    %423 = vsyncpa %s422, 1
    %424 = vsyncpa [#allocation5], 1

// kernel: run.1
$region0: #{run.1}
  #allocation0 [shape = 'u32[]', space=smem, size = 0x4, offset = 0x4, fixed_abs, tag = 'smem constant byte address 0x4 - core index']
  #allocation1 [shape = 'u32[72,128]{1,0:T(1,128)}', space=vmem, size = 0x9000, scoped, tag = 'internal scratch']
  %s0 = inlined_call_operand.hbm [shape: f32[2,4,16,16], index: 0, kind: input, shape index: {}]
  %s1 = inlined_call_operand.hbm [shape: f32[2,8,16], index: 1, kind: input, shape index: {}]
  %s2 = inlined_call_operand.hbm [shape: f32[16,16], index: 2, kind: input, shape index: {}]
  %s3 = inlined_call_operand.vmem [shape: f32[2,16,8,8], index: 3, kind: output, shape index: {}]
  %s4 = sld [smem:[#allocation0]]
  $region57: #{run.1} parent=0
    _
  %s6 = ssub.s32 1, %s4
  %s7 = scalar_select 0, %s6, %s4
  $region1: #{run.1} parent=0
    #allocation2 [shape = 'u8[65536]{0}', space=vmem, size = 0x10000, scoped, tag = 'input window, operand 0']
    #allocation3 [shape = 's32[2]{0}', space=sflag, size = 0x8, scoped, tag = 'scoped memory for run.1']
    #allocation4 [shape = 'u8[8192]{0}', space=vmem, size = 0x2000, scoped, tag = 'input window, operand 1, single buffered']
    #allocation5 [shape = 's32[1]{0}', space=sflag, size = 0x4, scoped, tag = 'scoped memory for run.1']
    #allocation6 [shape = 'u8[8192]{0}', space=vmem, size = 0x2000, scoped, tag = 'input window, operand 2, single buffered']
    %8 = vsyncpa [#allocation3], 0
    %s9 = scalar_lea.sflag [#allocation3], 1
    %10 = vsyncpa %s9, 0
    %11 = vsyncpa [#allocation5], 0
    loop: start=0, step=1, limit=4
    $region2: #{run.1} parent=1 // loop_pre_header
      _
    $region3: #{run.1} parent=1 // loop_header
      %s13 = sphi 0, %s17
      %p14 = scmp.ge.s32.totalorder %s13, 4
      %s20 = sphi 0, %s39
      %s21 = sphi 0, %s35
      %s22 = sphi 0, %s31
      %s23 = sphi 0, %s20
      %s24 = sphi 0, %s21
      %s25 = sphi 0, %s22
      %s26 = sphi 0, %s23
      %s27 = sphi 0, %s24
      %s28 = sphi 0, %s25
      %s46 = sphi 0, %s48
      %s49 = sphi 0, %s46
      %s50 = sphi 0, %s49
      %s66 = sphi 0, %s50
      %s70 = sphi 0, %s70
      %s72 = sphi 0, %s70
      %s73 = sphi 0, %s72
      %s87 = sphi 0, %s73
      %s91 = sphi 0, %s91
      %s93 = sphi 0, %s91
      %s94 = sphi 0, %s93
      %s108 = sphi 0, %s94
      %s118 = sphi 0, %s120
      %s121 = sphi 0, %s118
      %s122 = sphi 0, %s121
      %s138 = sphi 0, %s122
    $region4: #{run.1} parent=1 // loop_header_branch
      %16 = sbr.rel (%p14) target = $region8
    $region5: #{run.1} parent=1 // loop_body
      %s18 = ssub.s32 %s13, 1
      %s19 = ssub.s32 %s13, 2
      %s29 = sadd.s32 1, %s22
      %p30 = scmp.ge.s32.totalorder %s29, 1
      %s31 = scalar_select %p30, 0, %s29
      %s32 = sadd.s32 1, %s21
      %s33 = scalar_select %p30, %s32, %s21
      %p34 = scmp.ge.s32.totalorder %s33, 1
      %s35 = scalar_select %p34, 0, %s33
      %s36 = sadd.s32 1, %s20
      %s37 = scalar_select %p34, %s36, %s20
      %p38 = scmp.ge.s32.totalorder %s37, 2
      %s39 = scalar_select %p38, 0, %s37
      %s40 = ssub.s32 %s20, %s39
      %s41 = ssub.s32 %s21, %s35
      %s42 = sor.u32 %s40, %s41
      %s43 = ssub.s32 %s22, %s31
      %s44 = sor.u32 %s42, %s43
      %p45 = scmp.eq.s32.totalorder %s44, 0
      %s47 = sadd.s32 %s46, 1
      %s48 = scalar_select %p45, %s46, %s47
      %p51 = pneg %p45
      %p52 = scmp.eq.s32.totalorder %s13, 1
      %p53 = por %p51, %p52
      %p54 = scmp.ne.s32.totalorder %s46, %s49
      %p55 = scmp.eq.s32.totalorder %s13, 0
      %p56 = por %p54, %p55
      %p57 = scmp.ne.s32.totalorder %s46, %s49
      %p58 = scmp.eq.s32.totalorder %s18, 1
      %p59 = por %p57, %p58
      %p60 = scmp.ne.s32.totalorder %s49, %s50
      %p61 = scmp.eq.s32.totalorder %s18, 0
      %p62 = por %p60, %p61
      %p63 = scmp.ne.s32.totalorder %s49, %s50
      %p64 = scmp.eq.s32.totalorder %s19, 1
      %p65 = por %p63, %p64
      %p67 = scmp.ne.s32.totalorder %s50, %s66
      %p68 = scmp.eq.s32.totalorder %s19, 0
      %p69 = por %p67, %p68
      %s71 = sadd.s32 %s70, 1
      %p74 = scmp.eq.s32.totalorder %s13, 1
      %p75 = scmp.ne.s32.totalorder %s70, %s72
      %p76 = scmp.eq.s32.totalorder %s13, 0
      %p77 = por %p75, %p76
      %p78 = scmp.ne.s32.totalorder %s70, %s72
      %p79 = scmp.eq.s32.totalorder %s18, 1
      %p80 = por %p78, %p79
      %p81 = scmp.ne.s32.totalorder %s72, %s73
      %p82 = scmp.eq.s32.totalorder %s18, 0
      %p83 = por %p81, %p82
      %p84 = scmp.ne.s32.totalorder %s72, %s73
      %p85 = scmp.eq.s32.totalorder %s19, 1
      %p86 = por %p84, %p85
      %p88 = scmp.ne.s32.totalorder %s73, %s87
      %p89 = scmp.eq.s32.totalorder %s19, 0
      %p90 = por %p88, %p89
      %s92 = sadd.s32 %s91, 1
      %p95 = scmp.eq.s32.totalorder %s13, 1
      %p96 = scmp.ne.s32.totalorder %s91, %s93
      %p97 = scmp.eq.s32.totalorder %s13, 0
      %p98 = por %p96, %p97
      %p99 = scmp.ne.s32.totalorder %s91, %s93
      %p100 = scmp.eq.s32.totalorder %s18, 1
      %p101 = por %p99, %p100
      %p102 = scmp.ne.s32.totalorder %s93, %s94
      %p103 = scmp.eq.s32.totalorder %s18, 0
      %p104 = por %p102, %p103
      %p105 = scmp.ne.s32.totalorder %s93, %s94
      %p106 = scmp.eq.s32.totalorder %s19, 1
      %p107 = por %p105, %p106
      %p109 = scmp.ne.s32.totalorder %s94, %s108
      %p110 = scmp.eq.s32.totalorder %s19, 0
      %p111 = por %p109, %p110
      %s112 = ssub.s32 %s20, %s39
      %s113 = ssub.s32 %s21, %s35
      %s114 = sor.u32 %s112, %s113
      %s115 = ssub.s32 %s22, %s31
      %s116 = sor.u32 %s114, %s115
      %p117 = scmp.eq.s32.totalorder %s116, 0
      %s119 = sadd.s32 %s118, 1
      %s120 = scalar_select %p117, %s118, %s119
      %p123 = pneg %p117
      %p124 = scmp.eq.s32.totalorder %s13, 1
      %p125 = por %p123, %p124
      %p126 = scmp.ne.s32.totalorder %s118, %s121
      %p127 = scmp.eq.s32.totalorder %s13, 0
      %p128 = por %p126, %p127
      %p129 = scmp.ne.s32.totalorder %s118, %s121
      %p130 = scmp.eq.s32.totalorder %s18, 1
      %p131 = por %p129, %p130
      %p132 = scmp.ne.s32.totalorder %s121, %s122
      %p133 = scmp.eq.s32.totalorder %s18, 0
      %p134 = por %p132, %p133
      %p135 = scmp.ne.s32.totalorder %s121, %s122
      %p136 = scmp.eq.s32.totalorder %s19, 1
      %p137 = por %p135, %p136
      %p139 = scmp.ne.s32.totalorder %s122, %s138
      %p140 = scmp.eq.s32.totalorder %s19, 0
      %p141 = por %p139, %p140
      %p142 = scmp.le.s32.totalorder 1, %s13
      %p143 = scmp.lt.s32.totalorder %s13, 3
      %p144 = pnand %p142, %p143
      %p145 = pneg %p144
      // Predicated region
      $region9: #{run.1} parent=5 // pred_check
        _
      $region10: #{run.1} parent=5 // pred_check_branch
        %147 = sbr.rel (%p144) target = $region12
      $region11: #{run.1} parent=5 // pred_region
        %s148 = ssub.s32 %s13, 1
        // Predicated region
        $region13: #{run.1} parent=11 // pred_check
          %p149 = pneg %p83
        $region14: #{run.1} parent=11 // pred_check_branch
          %151 = sbr.rel (%p149) target = $region16
        $region15: #{run.1} parent=11 // pred_region
          %153 = vsyncadd [#allocation5], 0
          %s154 = sshll.u32 %s1, 4
          %s155 = int_to_ptr.hbm [resolvable:$true] %s154
          %s156 = sshll.u32 [#allocation4], 4
          %s157 = int_to_ptr.vmem [resolvable:$true] %s156
          %162 = dma.hbm_to_vmem [thread:$0]  %s155, 256, %s157, [#allocation5], 128, 128, 8
        $region16: #{run.1} parent=11 // pred_fallthru
          _
        // Predicated region
        $region17: #{run.1} parent=11 // pred_check
          %p163 = pneg %p104
        $region18: #{run.1} parent=11 // pred_check_branch
          %165 = sbr.rel (%p163) target = $region20
        $region19: #{run.1} parent=11 // pred_region
          %167 = vsyncadd [#allocation5], 0
          %s168 = sshll.u32 %s2, 4
          %s169 = int_to_ptr.hbm [resolvable:$true] %s168
          %s170 = sshll.u32 [#allocation6], 4
          %s171 = int_to_ptr.vmem [resolvable:$true] %s170
          %176 = dma.hbm_to_vmem [thread:$0]  %s169, 256, %s171, [#allocation5], 128, 128, 8
        $region20: #{run.1} parent=11 // pred_fallthru
          _
      $region12: #{run.1} parent=5 // pred_fallthru
        _
      %p177 = scmp.lt.s32.totalorder %s13, 2
      // Predicated region
      $region21: #{run.1} parent=5 // pred_check
        %p178 = pneg %p177
      $region22: #{run.1} parent=5 // pred_check_branch
        %180 = sbr.rel (%p178) target = $region24
      $region23: #{run.1} parent=5 // pred_region
        // Predicated region
        $region25: #{run.1} parent=23 // pred_check
          %p181 = pneg %p56
        $region26: #{run.1} parent=23 // pred_check_branch
          %183 = sbr.rel (%p181) target = $region28
        $region27: #{run.1} parent=23 // pred_region
          %s184 = sand.u32 %s46, 1
          %s185 = scalar_lea.sflag [#allocation3], %s184
          %s186 = sand.u32 %s46, 1
          %s187 = smul.addr %s186, 64
          %s188 = scalar_lea.vmem [#allocation2], %s187
          %s189 = smul.u32 4, %s21
          %s190 = smul.u32 2, %s22
          %192 = vsyncadd %s185, 0
          %s193 = smul.addr %s189, 2
          %s194 = sadd.s32 %s190, %s193
          %s195 = smul.addr %s20, 8
          %s196 = sadd.s32 %s194, %s195
          %s197 = smul.addr %s196, 8
          %s198 = scalar_lea.hbm %s0, %s197
          %s199 = sshll.u32 %s198, 4
          %s200 = int_to_ptr.hbm [resolvable:$true] %s199
          %s201 = sshll.u32 %s188, 4
          %s202 = int_to_ptr.vmem [resolvable:$true] %s201
          %207 = dma.hbm_to_vmem [thread:$0]  %s200, 1024, %s202, %s185, 128, 128, 8
        $region28: #{run.1} parent=23 // pred_fallthru
          _
      $region24: #{run.1} parent=5 // pred_fallthru
        _
      %p208 = scmp.le.s32.totalorder 1, %s13
      %p209 = scmp.lt.s32.totalorder %s13, 3
      %p210 = pnand %p208, %p209
      %p211 = pneg %p210
      // Predicated region
      $region29: #{run.1} parent=5 // pred_check
        _
      $region30: #{run.1} parent=5 // pred_check_branch
        %213 = sbr.rel (%p210) target = $region32
      $region31: #{run.1} parent=5 // pred_region
        %s214 = ssub.s32 %s13, 1
        %s215 = sand.u32 %s49, 1
        %s216 = scalar_lea.sflag [#allocation3], %s215
        %s217 = sand.u32 %s49, 1
        %s218 = smul.addr %s217, 64
        %s219 = scalar_lea.vmem [#allocation2], %s218
        // Predicated region
        $region33: #{run.1} parent=31 // pred_check
          %p220 = pneg %p62
        $region34: #{run.1} parent=31 // pred_check_branch
          %222 = sbr.rel (%p220) target = $region36
        $region35: #{run.1} parent=31 // pred_region
          %224 = dma.done %s216, 1024
        $region36: #{run.1} parent=31 // pred_fallthru
          _
        // Predicated region
        $region37: #{run.1} parent=31 // pred_check
          %p225 = pneg %p83
        $region38: #{run.1} parent=31 // pred_check_branch
          %227 = sbr.rel (%p225) target = $region40
        $region39: #{run.1} parent=31 // pred_region
          %229 = dma.done [#allocation5], 256
        $region40: #{run.1} parent=31 // pred_fallthru
          _
        // Predicated region
        $region41: #{run.1} parent=31 // pred_check
          %p230 = pneg %p104
        $region42: #{run.1} parent=31 // pred_check_branch
          %232 = sbr.rel (%p230) target = $region44
        $region43: #{run.1} parent=31 // pred_region
          %234 = dma.done [#allocation5], 256
        $region44: #{run.1} parent=31 // pred_fallthru
          _
        %s235 = sand.u32 %s49, 1
        %s236 = scalar_lea.sflag [#allocation3], %s235
        %s237 = sand.u32 %s49, 1
        %s238 = smul.addr %s237, 64
        %s239 = scalar_lea.vmem [#allocation2], %s238
        %p240 = pneg %p62
        %p241 = pneg %p59
        %p242 = pneg %p83
        %p243 = pneg %p80
        %p244 = pneg %p104
        %p245 = pneg %p101
        %p246 = pneg %p134
        %p247 = pneg %p131
        %s248 = smul.u32 16, %s24
        %p249 = scmp.lt.s32.totalorder %s23, 1
        %s250 = scalar_select %p249, %s23, 1
        %p251 = scmp.lt.s32.totalorder %s248, 15
        %s252 = scalar_select %p251, %s248, 15
        %p253 = scmp.lt.s32.totalorder %s25, 0
        %s254 = scalar_select %p253, %s25, 0
        %s255 = sadd.s32 %s254, %s252
        %s256 = smul.addr %s250, 16
        %s257 = sadd.s32 %s255, %s256
        %s258 = smul.addr %s257, 8
        %s259 = scalar_lea.vmem %s3, %s258
        %s260 = smul.u32 4, %s24
        %s261 = smul.u32 2, %s25
        %s262 = smul.u32 16, %s24
        %p263 = scmp.lt.s32.totalorder %s23, 1
        %s264 = scalar_select %p263, %s23, 1
        %p265 = scmp.lt.s32.totalorder %s262, 15
        %s266 = scalar_select %p265, %s262, 15
        %p267 = scmp.lt.s32.totalorder %s25, 0
        %s268 = scalar_select %p267, %s25, 0
        %s269 = sadd.s32 %s268, %s266
        %s270 = smul.addr %s264, 16
        %s271 = sadd.s32 %s269, %s270
        %s272 = smul.addr %s271, 8
        %s273 = scalar_lea.vmem %s3, %s272
        %s274 = smul.u32 16, %s24
        %v275 = vld [vmem:[%s219] sm:$0xff]
        %v276 = vld [vmem:[%s219 + $0x8] sm:$0xff]
        %v277 = vld [vmem:[#allocation4] sm:$0xff]
        %vm278 = vcmask 130048
        %v280 = vsel %vm278, %v277, 0
        %282 = vmatpush.msra.mxu0 0.0
        %283 = vmatpush.msra.mxu0 0.0
        %284 = vmatpush.msra.mxu0 0.0
        %285 = vmatpush.msra.mxu0 0.0
        %286 = vmatpush.msra.mxu0 0.0
        %287 = vmatpush.msra.mxu0 0.0
        %288 = vmatpush.msra.mxu0 0.0
        %289 = vmatpush.msra.mxu0 0.0
        %290 = vmatpush.msra.mxu0 0.0
        %291 = vmatpush.msra.mxu0 0.0
        %292 = vmatpush.msra.mxu0 0.0
        %293 = vmatpush.msra.mxu0 0.0
        %294 = vmatpush.msra.mxu0 0.0
        %295 = vmatpush.msra.mxu0 0.0
        %296 = vmatpush.msra.mxu0 %v276
        %297 = vmatpush.msra.mxu0 %v275
        %298 = vmatmul.f32.gmra.mxu0 %v280
        %v299 = vpop.f32.mrf.mxu0
        %v300 = vadd.f32 0.0, %v299
        %301 = vdwg.mxu0
        %v302 = vld [vmem:[#allocation6] sm:$0xff]
        %v303 = vld [vmem:[#allocation6 + $0x8] sm:$0xff]
        %v305 = vsel %vm278, %v300, 0
        %307 = vmatpush.msra.mxu0 0.0
        %308 = vmatpush.msra.mxu0 0.0
        %309 = vmatpush.msra.mxu0 0.0
        %310 = vmatpush.msra.mxu0 0.0
        %311 = vmatpush.msra.mxu0 0.0
        %312 = vmatpush.msra.mxu0 0.0
        %313 = vmatpush.msra.mxu0 0.0
        %314 = vmatpush.msra.mxu0 0.0
        %315 = vmatpush.msra.mxu0 0.0
        %316 = vmatpush.msra.mxu0 0.0
        %317 = vmatpush.msra.mxu0 0.0
        %318 = vmatpush.msra.mxu0 0.0
        %319 = vmatpush.msra.mxu0 0.0
        %320 = vmatpush.msra.mxu0 0.0
        %321 = vmatpush.msra.mxu0 %v303
        %322 = vmatpush.msra.mxu0 %v302
        %323 = vmatmul.f32.gmra.mxu0 %v305
        %v324 = vpop.f32.mrf.mxu0
        %v325 = vadd.f32 0.0, %v324
        %326 = vdwg.mxu0
        %vm327 = vcmask 64512
        %328 = vst.msk [vmem:[%s273] sm:$0xff] %vm327, %v325
        %330 = vrot.lane.b32.xlu0 %v325, 120
        %v331 = vpop.permute.xlu0 %330
        %s333 = scalar_lea.vmem %s273, 8
        %334 = vst.msk [vmem:[%s333] sm:$0xff] %vm327, %v331
        %s335 = scalar_lea.vmem [#allocation4], 8
        %v336 = vld [vmem:[%s335] sm:$0xff]
        %v338 = vsel %vm278, %v336, 0
        %340 = vmatpush.msra.mxu0 0.0
        %341 = vmatpush.msra.mxu0 0.0
        %342 = vmatpush.msra.mxu0 0.0
        %343 = vmatpush.msra.mxu0 0.0
        %344 = vmatpush.msra.mxu0 0.0
        %345 = vmatpush.msra.mxu0 0.0
        %346 = vmatpush.msra.mxu0 0.0
        %347 = vmatpush.msra.mxu0 0.0
        %348 = vmatpush.msra.mxu0 0.0
        %349 = vmatpush.msra.mxu0 0.0
        %350 = vmatpush.msra.mxu0 0.0
        %351 = vmatpush.msra.mxu0 0.0
        %352 = vmatpush.msra.mxu0 0.0
        %353 = vmatpush.msra.mxu0 0.0
        %354 = vmatpush.msra.mxu0 %v276
        %355 = vmatpush.msra.mxu0 %v275
        %356 = vmatmul.f32.gmra.mxu0 %v338
        %v357 = vpop.f32.mrf.mxu0
        %v358 = vadd.f32 0.0, %v357
        %359 = vdwg.mxu0
        %v360 = vld [vmem:[#allocation6] sm:$0xff]
        %v361 = vld [vmem:[#allocation6 + $0x8] sm:$0xff]
        %v363 = vsel %vm278, %v358, 0
        %365 = vmatpush.msra.mxu0 0.0
        %366 = vmatpush.msra.mxu0 0.0
        %367 = vmatpush.msra.mxu0 0.0
        %368 = vmatpush.msra.mxu0 0.0
        %369 = vmatpush.msra.mxu0 0.0
        %370 = vmatpush.msra.mxu0 0.0
        %371 = vmatpush.msra.mxu0 0.0
        %372 = vmatpush.msra.mxu0 0.0
        %373 = vmatpush.msra.mxu0 0.0
        %374 = vmatpush.msra.mxu0 0.0
        %375 = vmatpush.msra.mxu0 0.0
        %376 = vmatpush.msra.mxu0 0.0
        %377 = vmatpush.msra.mxu0 0.0
        %378 = vmatpush.msra.mxu0 0.0
        %379 = vmatpush.msra.mxu0 %v361
        %380 = vmatpush.msra.mxu0 %v360
        %381 = vmatmul.f32.gmra.mxu0 %v363
        %v382 = vpop.f32.mrf.mxu0
        %v383 = vadd.f32 0.0, %v382
        %384 = vdwg.mxu0
        %s385 = scalar_lea.vmem %s273, 16
        %386 = vst.msk [vmem:[%s385] sm:$0xff] %vm327, %v383
        %388 = vrot.lane.b32.xlu0 %v383, 120
        %v389 = vpop.permute.xlu0 %388
        %s391 = scalar_lea.vmem %s273, 24
        %392 = vst.msk [vmem:[%s391] sm:$0xff] %vm327, %v389
        %s393 = scalar_lea.vmem %s219, 16 [#allocation2]
        %v394 = vld [vmem:[%s393] sm:$0xff]
        %v395 = vld [vmem:[%s393 + $0x8] sm:$0xff]
        %v396 = vld [vmem:[#allocation4] sm:$0xff]
        %v398 = vsel %vm278, %v396, 0
        %400 = vmatpush.msra.mxu0 0.0
        %401 = vmatpush.msra.mxu0 0.0
        %402 = vmatpush.msra.mxu0 0.0
        %403 = vmatpush.msra.mxu0 0.0
        %404 = vmatpush.msra.mxu0 0.0
        %405 = vmatpush.msra.mxu0 0.0
        %406 = vmatpush.msra.mxu0 0.0
        %407 = vmatpush.msra.mxu0 0.0
        %408 = vmatpush.msra.mxu0 0.0
        %409 = vmatpush.msra.mxu0 0.0
        %410 = vmatpush.msra.mxu0 0.0
        %411 = vmatpush.msra.mxu0 0.0
        %412 = vmatpush.msra.mxu0 0.0
        %413 = vmatpush.msra.mxu0 0.0
        %414 = vmatpush.msra.mxu0 %v395
        %415 = vmatpush.msra.mxu0 %v394
        %416 = vmatmul.f32.gmra.mxu0 %v398
        %v417 = vpop.f32.mrf.mxu0
        %v418 = vadd.f32 0.0, %v417
        %419 = vdwg.mxu0
        %v420 = vld [vmem:[#allocation6] sm:$0xff]
        %v421 = vld [vmem:[#allocation6 + $0x8] sm:$0xff]
        %v423 = vsel %vm278, %v418, 0
        %425 = vmatpush.msra.mxu0 0.0
        %426 = vmatpush.msra.mxu0 0.0
        %427 = vmatpush.msra.mxu0 0.0
        %428 = vmatpush.msra.mxu0 0.0
        %429 = vmatpush.msra.mxu0 0.0
        %430 = vmatpush.msra.mxu0 0.0
        %431 = vmatpush.msra.mxu0 0.0
        %432 = vmatpush.msra.mxu0 0.0
        %433 = vmatpush.msra.mxu0 0.0
        %434 = vmatpush.msra.mxu0 0.0
        %435 = vmatpush.msra.mxu0 0.0
        %436 = vmatpush.msra.mxu0 0.0
        %437 = vmatpush.msra.mxu0 0.0
        %438 = vmatpush.msra.mxu0 0.0
        %439 = vmatpush.msra.mxu0 %v421
        %440 = vmatpush.msra.mxu0 %v420
        %441 = vmatmul.f32.gmra.mxu0 %v423
        %v442 = vpop.f32.mrf.mxu0
        %v443 = vadd.f32 0.0, %v442
        %444 = vdwg.mxu0
        %s445 = scalar_lea.vmem %s273, 32
        %446 = vst.msk [vmem:[%s445] sm:$0xff] %vm327, %v443
        %448 = vrot.lane.b32.xlu0 %v443, 120
        %v449 = vpop.permute.xlu0 %448
        %s451 = scalar_lea.vmem %s273, 40
        %452 = vst.msk [vmem:[%s451] sm:$0xff] %vm327, %v449
        %v453 = vld [vmem:[%s335] sm:$0xff]
        %v455 = vsel %vm278, %v453, 0
        %457 = vmatpush.msra.mxu0 0.0
        %458 = vmatpush.msra.mxu0 0.0
        %459 = vmatpush.msra.mxu0 0.0
        %460 = vmatpush.msra.mxu0 0.0
        %461 = vmatpush.msra.mxu0 0.0
        %462 = vmatpush.msra.mxu0 0.0
        %463 = vmatpush.msra.mxu0 0.0
        %464 = vmatpush.msra.mxu0 0.0
        %465 = vmatpush.msra.mxu0 0.0
        %466 = vmatpush.msra.mxu0 0.0
        %467 = vmatpush.msra.mxu0 0.0
        %468 = vmatpush.msra.mxu0 0.0
        %469 = vmatpush.msra.mxu0 0.0
        %470 = vmatpush.msra.mxu0 0.0
        %471 = vmatpush.msra.mxu0 %v395
        %472 = vmatpush.msra.mxu0 %v394
        %473 = vmatmul.f32.gmra.mxu0 %v455
        %v474 = vpop.f32.mrf.mxu0
        %v475 = vadd.f32 0.0, %v474
        %476 = vdwg.mxu0
        %v477 = vld [vmem:[#allocation6] sm:$0xff]
        %v478 = vld [vmem:[#allocation6 + $0x8] sm:$0xff]
        %v480 = vsel %vm278, %v475, 0
        %482 = vmatpush.msra.mxu0 0.0
        %483 = vmatpush.msra.mxu0 0.0
        %484 = vmatpush.msra.mxu0 0.0
        %485 = vmatpush.msra.mxu0 0.0
        %486 = vmatpush.msra.mxu0 0.0
        %487 = vmatpush.msra.mxu0 0.0
        %488 = vmatpush.msra.mxu0 0.0
        %489 = vmatpush.msra.mxu0 0.0
        %490 = vmatpush.msra.mxu0 0.0
        %491 = vmatpush.msra.mxu0 0.0
        %492 = vmatpush.msra.mxu0 0.0
        %493 = vmatpush.msra.mxu0 0.0
        %494 = vmatpush.msra.mxu0 0.0
        %495 = vmatpush.msra.mxu0 0.0
        %496 = vmatpush.msra.mxu0 %v478
        %497 = vmatpush.msra.mxu0 %v477
        %498 = vmatmul.f32.gmra.mxu0 %v480
        %v499 = vpop.f32.mrf.mxu0
        %v500 = vadd.f32 0.0, %v499
        %501 = vdwg.mxu0
        %s502 = scalar_lea.vmem %s273, 48
        %503 = vst.msk [vmem:[%s502] sm:$0xff] %vm327, %v500
        %505 = vrot.lane.b32.xlu0 %v500, 120
        %v506 = vpop.permute.xlu0 %505
        %s508 = scalar_lea.vmem %s273, 56
        %509 = vst.msk [vmem:[%s508] sm:$0xff] %vm327, %v506
        %s510 = scalar_lea.vmem %s219, 32 [#allocation2]
        %v511 = vld [vmem:[%s510] sm:$0xff]
        %v512 = vld [vmem:[%s510 + $0x8] sm:$0xff]
        %v513 = vld [vmem:[#allocation4] sm:$0xff]
        %v515 = vsel %vm278, %v513, 0
        %517 = vmatpush.msra.mxu0 0.0
        %518 = vmatpush.msra.mxu0 0.0
        %519 = vmatpush.msra.mxu0 0.0
        %520 = vmatpush.msra.mxu0 0.0
        %521 = vmatpush.msra.mxu0 0.0
        %522 = vmatpush.msra.mxu0 0.0
        %523 = vmatpush.msra.mxu0 0.0
        %524 = vmatpush.msra.mxu0 0.0
        %525 = vmatpush.msra.mxu0 0.0
        %526 = vmatpush.msra.mxu0 0.0
        %527 = vmatpush.msra.mxu0 0.0
        %528 = vmatpush.msra.mxu0 0.0
        %529 = vmatpush.msra.mxu0 0.0
        %530 = vmatpush.msra.mxu0 0.0
        %531 = vmatpush.msra.mxu0 %v512
        %532 = vmatpush.msra.mxu0 %v511
        %533 = vmatmul.f32.gmra.mxu0 %v515
        %v534 = vpop.f32.mrf.mxu0
        %v535 = vadd.f32 0.0, %v534
        %536 = vdwg.mxu0
        %v537 = vld [vmem:[#allocation6] sm:$0xff]
        %v538 = vld [vmem:[#allocation6 + $0x8] sm:$0xff]
        %v540 = vsel %vm278, %v535, 0
        %542 = vmatpush.msra.mxu0 0.0
        %543 = vmatpush.msra.mxu0 0.0
        %544 = vmatpush.msra.mxu0 0.0
        %545 = vmatpush.msra.mxu0 0.0
        %546 = vmatpush.msra.mxu0 0.0
        %547 = vmatpush.msra.mxu0 0.0
        %548 = vmatpush.msra.mxu0 0.0
        %549 = vmatpush.msra.mxu0 0.0
        %550 = vmatpush.msra.mxu0 0.0
        %551 = vmatpush.msra.mxu0 0.0
        %552 = vmatpush.msra.mxu0 0.0
        %553 = vmatpush.msra.mxu0 0.0
        %554 = vmatpush.msra.mxu0 0.0
        %555 = vmatpush.msra.mxu0 0.0
        %556 = vmatpush.msra.mxu0 %v538
        %557 = vmatpush.msra.mxu0 %v537
        %558 = vmatmul.f32.gmra.mxu0 %v540
        %v559 = vpop.f32.mrf.mxu0
        %v560 = vadd.f32 0.0, %v559
        %561 = vdwg.mxu0
        %s562 = scalar_lea.vmem %s273, 64
        %563 = vst.msk [vmem:[%s562] sm:$0xff] %vm327, %v560
        %565 = vrot.lane.b32.xlu0 %v560, 120
        %v566 = vpop.permute.xlu0 %565
        %s568 = scalar_lea.vmem %s273, 72
        %569 = vst.msk [vmem:[%s568] sm:$0xff] %vm327, %v566
        %v570 = vld [vmem:[%s335] sm:$0xff]
        %v572 = vsel %vm278, %v570, 0
        %574 = vmatpush.msra.mxu0 0.0
        %575 = vmatpush.msra.mxu0 0.0
        %576 = vmatpush.msra.mxu0 0.0
        %577 = vmatpush.msra.mxu0 0.0
        %578 = vmatpush.msra.mxu0 0.0
        %579 = vmatpush.msra.mxu0 0.0
        %580 = vmatpush.msra.mxu0 0.0
        %581 = vmatpush.msra.mxu0 0.0
        %582 = vmatpush.msra.mxu0 0.0
        %583 = vmatpush.msra.mxu0 0.0
        %584 = vmatpush.msra.mxu0 0.0
        %585 = vmatpush.msra.mxu0 0.0
        %586 = vmatpush.msra.mxu0 0.0
        %587 = vmatpush.msra.mxu0 0.0
        %588 = vmatpush.msra.mxu0 %v512
        %589 = vmatpush.msra.mxu0 %v511
        %590 = vmatmul.f32.gmra.mxu0 %v572
        %v591 = vpop.f32.mrf.mxu0
        %v592 = vadd.f32 0.0, %v591
        %593 = vdwg.mxu0
        %v594 = vld [vmem:[#allocation6] sm:$0xff]
        %v595 = vld [vmem:[#allocation6 + $0x8] sm:$0xff]
        %v597 = vsel %vm278, %v592, 0
        %599 = vmatpush.msra.mxu0 0.0
        %600 = vmatpush.msra.mxu0 0.0
        %601 = vmatpush.msra.mxu0 0.0
        %602 = vmatpush.msra.mxu0 0.0
        %603 = vmatpush.msra.mxu0 0.0
        %604 = vmatpush.msra.mxu0 0.0
        %605 = vmatpush.msra.mxu0 0.0
        %606 = vmatpush.msra.mxu0 0.0
        %607 = vmatpush.msra.mxu0 0.0
        %608 = vmatpush.msra.mxu0 0.0
        %609 = vmatpush.msra.mxu0 0.0
        %610 = vmatpush.msra.mxu0 0.0
        %611 = vmatpush.msra.mxu0 0.0
        %612 = vmatpush.msra.mxu0 0.0
        %613 = vmatpush.msra.mxu0 %v595
        %614 = vmatpush.msra.mxu0 %v594
        %615 = vmatmul.f32.gmra.mxu0 %v597
        %v616 = vpop.f32.mrf.mxu0
        %v617 = vadd.f32 0.0, %v616
        %618 = vdwg.mxu0
        %s619 = scalar_lea.vmem %s273, 80
        %620 = vst.msk [vmem:[%s619] sm:$0xff] %vm327, %v617
        %622 = vrot.lane.b32.xlu0 %v617, 120
        %v623 = vpop.permute.xlu0 %622
        %s625 = scalar_lea.vmem %s273, 88
        %626 = vst.msk [vmem:[%s625] sm:$0xff] %vm327, %v623
        %s627 = scalar_lea.vmem %s219, 48 [#allocation2]
        %v628 = vld [vmem:[%s627] sm:$0xff]
        %v629 = vld [vmem:[%s627 + $0x8] sm:$0xff]
        %v630 = vld [vmem:[#allocation4] sm:$0xff]
        %v632 = vsel %vm278, %v630, 0
        %634 = vmatpush.msra.mxu0 0.0
        %635 = vmatpush.msra.mxu0 0.0
        %636 = vmatpush.msra.mxu0 0.0
        %637 = vmatpush.msra.mxu0 0.0
        %638 = vmatpush.msra.mxu0 0.0
        %639 = vmatpush.msra.mxu0 0.0
        %640 = vmatpush.msra.mxu0 0.0
        %641 = vmatpush.msra.mxu0 0.0
        %642 = vmatpush.msra.mxu0 0.0
        %643 = vmatpush.msra.mxu0 0.0
        %644 = vmatpush.msra.mxu0 0.0
        %645 = vmatpush.msra.mxu0 0.0
        %646 = vmatpush.msra.mxu0 0.0
        %647 = vmatpush.msra.mxu0 0.0
        %648 = vmatpush.msra.mxu0 %v629
        %649 = vmatpush.msra.mxu0 %v628
        %650 = vmatmul.f32.gmra.mxu0 %v632
        %v651 = vpop.f32.mrf.mxu0
        %v652 = vadd.f32 0.0, %v651
        %653 = vdwg.mxu0
        %v654 = vld [vmem:[#allocation6] sm:$0xff]
        %v655 = vld [vmem:[#allocation6 + $0x8] sm:$0xff]
        %v657 = vsel %vm278, %v652, 0
        %659 = vmatpush.msra.mxu0 0.0
        %660 = vmatpush.msra.mxu0 0.0
        %661 = vmatpush.msra.mxu0 0.0
        %662 = vmatpush.msra.mxu0 0.0
        %663 = vmatpush.msra.mxu0 0.0
        %664 = vmatpush.msra.mxu0 0.0
        %665 = vmatpush.msra.mxu0 0.0
        %666 = vmatpush.msra.mxu0 0.0
        %667 = vmatpush.msra.mxu0 0.0
        %668 = vmatpush.msra.mxu0 0.0
        %669 = vmatpush.msra.mxu0 0.0
        %670 = vmatpush.msra.mxu0 0.0
        %671 = vmatpush.msra.mxu0 0.0
        %672 = vmatpush.msra.mxu0 0.0
        %673 = vmatpush.msra.mxu0 %v655
        %674 = vmatpush.msra.mxu0 %v654
        %675 = vmatmul.f32.gmra.mxu0 %v657
        %v676 = vpop.f32.mrf.mxu0
        %v677 = vadd.f32 0.0, %v676
        %678 = vdwg.mxu0
        %s679 = scalar_lea.vmem %s273, 96
        %680 = vst.msk [vmem:[%s679] sm:$0xff] %vm327, %v677
        %682 = vrot.lane.b32.xlu0 %v677, 120
        %v683 = vpop.permute.xlu0 %682
        %s685 = scalar_lea.vmem %s273, 104
        %686 = vst.msk [vmem:[%s685] sm:$0xff] %vm327, %v683
        %v687 = vld [vmem:[%s335] sm:$0xff]
        %v689 = vsel %vm278, %v687, 0
        %691 = vmatpush.msra.mxu0 0.0
        %692 = vmatpush.msra.mxu0 0.0
        %693 = vmatpush.msra.mxu0 0.0
        %694 = vmatpush.msra.mxu0 0.0
        %695 = vmatpush.msra.mxu0 0.0
        %696 = vmatpush.msra.mxu0 0.0
        %697 = vmatpush.msra.mxu0 0.0
        %698 = vmatpush.msra.mxu0 0.0
        %699 = vmatpush.msra.mxu0 0.0
        %700 = vmatpush.msra.mxu0 0.0
        %701 = vmatpush.msra.mxu0 0.0
        %702 = vmatpush.msra.mxu0 0.0
        %703 = vmatpush.msra.mxu0 0.0
        %704 = vmatpush.msra.mxu0 0.0
        %705 = vmatpush.msra.mxu0 %v629
        %706 = vmatpush.msra.mxu0 %v628
        %707 = vmatmul.f32.gmra.mxu0 %v689
        %v708 = vpop.f32.mrf.mxu0
        %v709 = vadd.f32 0.0, %v708
        %710 = vdwg.mxu0
        %v711 = vld [vmem:[#allocation6] sm:$0xff]
        %v712 = vld [vmem:[#allocation6 + $0x8] sm:$0xff]
        %v714 = vsel %vm278, %v709, 0
        %716 = vmatpush.msra.mxu0 0.0
        %717 = vmatpush.msra.mxu0 0.0
        %718 = vmatpush.msra.mxu0 0.0
        %719 = vmatpush.msra.mxu0 0.0
        %720 = vmatpush.msra.mxu0 0.0
        %721 = vmatpush.msra.mxu0 0.0
        %722 = vmatpush.msra.mxu0 0.0
        %723 = vmatpush.msra.mxu0 0.0
        %724 = vmatpush.msra.mxu0 0.0
        %725 = vmatpush.msra.mxu0 0.0
        %726 = vmatpush.msra.mxu0 0.0
        %727 = vmatpush.msra.mxu0 0.0
        %728 = vmatpush.msra.mxu0 0.0
        %729 = vmatpush.msra.mxu0 0.0
        %730 = vmatpush.msra.mxu0 %v712
        %731 = vmatpush.msra.mxu0 %v711
        %732 = vmatmul.f32.gmra.mxu0 %v714
        %v733 = vpop.f32.mrf.mxu0
        %v734 = vadd.f32 0.0, %v733
        %735 = vdwg.mxu0
        %s736 = scalar_lea.vmem %s273, 112
        %737 = vst.msk [vmem:[%s736] sm:$0xff] %vm327, %v734
        %739 = vrot.lane.b32.xlu0 %v734, 120
        %v740 = vpop.permute.xlu0 %739
        %s742 = scalar_lea.vmem %s273, 120
        %743 = vst.msk [vmem:[%s742] sm:$0xff] %vm327, %v740
        %s744 = smul.u32 16, %s24
        %p745 = scmp.lt.s32.totalorder %s23, 1
        %s746 = scalar_select %p745, %s23, 1
        %p747 = scmp.lt.s32.totalorder %s744, 15
        %s748 = scalar_select %p747, %s744, 15
        %p749 = scmp.lt.s32.totalorder %s25, 0
        %s750 = scalar_select %p749, %s25, 0
        %s751 = sadd.s32 %s750, %s748
        %s752 = smul.addr %s746, 16
        %s753 = sadd.s32 %s751, %s752
        %s754 = smul.addr %s753, 8
        %s755 = scalar_lea.vmem %s3, %s754
        // Predicated region
        $region45: #{run.1} parent=31 // pred_check
          %p756 = pneg %p131
        $region46: #{run.1} parent=31 // pred_check_branch
          %758 = sbr.rel (%p756) target = $region48
        $region47: #{run.1} parent=31 // pred_region
          %s759 = smul.u32 16, %s24
        $region48: #{run.1} parent=31 // pred_fallthru
          _
      $region32: #{run.1} parent=5 // pred_fallthru
        _
      %p760 = scmp.le.s32.totalorder 2, %s13
      // Predicated region
      $region49: #{run.1} parent=5 // pred_check
        %p761 = pneg %p760
      $region50: #{run.1} parent=5 // pred_check_branch
        %763 = sbr.rel (%p761) target = $region52
      $region51: #{run.1} parent=5 // pred_region
        %s764 = ssub.s32 %s13, 2
        // Predicated region
        $region53: #{run.1} parent=51 // pred_check
          %p765 = pneg %p137
        $region54: #{run.1} parent=51 // pred_check_branch
          %767 = sbr.rel (%p765) target = $region56
        $region55: #{run.1} parent=51 // pred_region
          %s768 = smul.u32 16, %s27
          %p769 = scmp.lt.s32.totalorder %s26, 1
          %s770 = scalar_select %p769, %s26, 1
          %p771 = scmp.lt.s32.totalorder %s768, 15
          %s772 = scalar_select %p771, %s768, 15
          %p773 = scmp.lt.s32.totalorder %s28, 0
          %s774 = scalar_select %p773, %s28, 0
          %s775 = sadd.s32 %s774, %s772
          %s776 = smul.addr %s770, 16
          %s777 = sadd.s32 %s775, %s776
          %s778 = smul.addr %s777, 8
          %s779 = scalar_lea.vmem %s3, %s778
        $region56: #{run.1} parent=51 // pred_fallthru
          _
      $region52: #{run.1} parent=5 // pred_fallthru
        _
    $region6: #{run.1} parent=1 // loop_footer
      %s17 = sadd.s32 1, %s13
    $region7: #{run.1} parent=1 // loop_footer_branch
      %12 = sbr.rel target = $region3
    $region8: #{run.1} parent=1 // loop_exit
      _
    %780 = vsyncpa [#allocation3], 1
    %s781 = scalar_lea.sflag [#allocation3], 1
    %782 = vsyncpa %s781, 1
    %783 = vsyncpa [#allocation5], 1

</llo_original>
